<compile_context>
chip_gen: v7x
topology: tpu7x:2x2x1
jax: 0.10.0
libtpu: 0.0.40
codegen_flags: <defaults>
</compile_context>

<pallas_src>
import jax
import jax.numpy as jnp
import numpy as np
from jax.experimental import pallas as pl
from jax.experimental.pallas import tpu as pltpu

BN_EPS = 1e-5
C_IN = 7            # input channels of conv1
C_OUT = 9           # true feature width of the module
C_PAD = 16          # channel dims padded to 16
HOMOG = C_PAD - 1   # pinned homogeneous channel (carries the folded bias/BN shift)
N_LAYERS = 5
K_REP = 16          # block-diagonal replication factor -> 256-wide MXU contraction
BD = K_REP * C_PAD  # 256


def feature_kernel(x_ref, w_ref, out_ref):
    # x_ref  : (BD, TILE)            bf16 activations, K_REP batch chunks stacked
    #                                 on the sublane axis, batch columns on lanes
    # w_ref  : (N_LAYERS, BD, BD)    bf16 block-diagonal folded weights
    #                                 (bias/BN shift folded via homogeneous row)
    # out_ref: (BD, TILE)            bf16, full padded block (no in-kernel slice)
    h = x_ref[...]
    for l in range(N_LAYERS):                      # tiny static unroll
        acc = jnp.dot(w_ref[l], h, preferred_element_type=jnp.float32)
        h = jnp.maximum(acc, 0.0).astype(jnp.bfloat16)
    out_ref[...] = h


def init_params(key):
    """Deterministic parameters matching the PyTorch module's shapes."""
    sizes = [(7, 9), (9, 9), (9, 9), (9, 9), (9, 9)]   # (in, out) per layer
    params = []
    for li, (cin, cout) in enumerate(sizes):
        k = jax.random.fold_in(key, li)
        kw, kb, kg, kbe, km, kv = jax.random.split(k, 6)
        W = jax.random.normal(kw, (cout, cin), jnp.float32) * 0.2   # torch (out, in)
        b = jax.random.normal(kb, (cout,), jnp.float32) * 0.1
        gamma = 1.0 + 0.1 * jax.random.normal(kg, (cout,), jnp.float32)
        beta = 0.1 * jax.random.normal(kbe, (cout,), jnp.float32)
        r_mean = 0.1 * jax.random.normal(km, (cout,), jnp.float32)
        r_var = jnp.abs(jax.random.normal(kv, (cout,), jnp.float32)) + 0.5
        params.append((W, b, gamma, beta, r_mean, r_var))
    return params


def _fold_params(params):
    """Fold bias + BN (eval) into one block-diagonal bf16 weight slab.

    The shift t' = (b - mean)*scale + beta is placed in column HOMOG, and
    row HOMOG is pinned to the identity so the homogeneous channel stays 1.0
    through every layer (and 0.0 for padded batch columns).
    """
    w_slab = jnp.zeros((N_LAYERS, C_PAD, C_PAD), jnp.float32)
    for l, (W, b, gamma, beta, r_mean, r_var) in enumerate(params):
        cout, cin = W.shape
        scale = gamma / jnp.sqrt(r_var + BN_EPS)
        w_fold = W * scale[:, None]                   # (cout, cin)
        t_fold = (b - r_mean) * scale + beta          # (cout,)
        w_slab = w_slab.at[l, :cout, :cin].set(w_fold)
        w_slab = w_slab.at[l, :cout, HOMOG].set(t_fold)
        w_slab = w_slab.at[l, HOMOG, HOMOG].set(1.0)
    # Block-diagonal replication: w_bd[l, c*16+a, c'*16+b] = (c==c') * w_slab[l,a,b]
    eye = jnp.eye(K_REP, dtype=jnp.float32)
    w_bd = eye[None, :, None, :, None] * w_slab[:, None, :, None, :]
    return w_bd.reshape(N_LAYERS, BD, BD).astype(jnp.bfloat16)


def feature_forward(x, params, *, tile_inner=1024):
    """x: (N, 7, 1) float32, NCL layout as in PyTorch. Returns (N, 9) float32."""
    N, C, L = x.shape
    assert C == C_IN and L == 1, "Feature.forward requires (N, 7, 1) input"

    w_bd = _fold_params(params)

    # Columns of the stacked (BD, n_inner) layout; each column carries K_REP
    # batch items.  Lane dim must be a multiple of 128, and we force >= 2 grid
    # steps so both v7x TensorCores are used even for tiny batches.
    n_inner0 = ((pl.cdiv(N, K_REP) + 127) // 128) * 128
    tile = min(tile_inner, max(128, ((pl.cdiv(n_inner0, 2) + 127) // 128) * 128))
    steps = max(2, pl.cdiv(n_inner0, tile))
    n_inner = steps * tile
    n_pad = K_REP * n_inner

    # Build the stacked lane-dense layout directly; homogeneous channel = 1.0 for
    # valid rows (bias carrier), 0.0 for padded rows (keeps their outputs zero).
    # TODO(synk): in a full pipeline keep activations in this stacked layout
    # across module boundaries so neither layout pass below is materialized.
    xf = x.reshape(N, C).astype(jnp.bfloat16)
    x_pad = (jnp.zeros((n_pad, C_PAD), jnp.bfloat16)
             .at[:N, :C].set(xf)
             .at[:N, HOMOG].set(1.0))
    x_stacked = (x_pad.reshape(K_REP, n_inner, C_PAD)
                 .transpose(0, 2, 1)
                 .reshape(BD, n_inner))

    out_stacked = pl.pallas_call(
        feature_kernel,
        out_shape=jax.ShapeDtypeStruct((BD, n_inner), jnp.bfloat16),
        grid=(steps,),
        in_specs=[
            pl.BlockSpec((BD, tile), lambda i: (0, i)),
            pl.BlockSpec((N_LAYERS, BD, BD), lambda i: (0, 0, 0)),
        ],
        out_specs=pl.BlockSpec((BD, tile), lambda i: (0, i)),
        compiler_params=pltpu.CompilerParams(
            dimension_semantics=("parallel",)),
    )(x_stacked, w_bd)

    # Unstack back to (N, 9) PyTorch layout; drop channel & batch padding.
    out = (out_stacked.reshape(K_REP, C_PAD, n_inner)
           .transpose(0, 2, 1)
           .reshape(n_pad, C_PAD))[:N, :C_OUT]
    return out.astype(jnp.float32)


def feature_reference(x, params):
    """Pure-JAX f32 reference (eval-mode PyTorch semantics)."""
    h = x.reshape(x.shape[0], x.shape[1]).astype(jnp.float32)
    for (W, b, gamma, beta, r_mean, r_var) in params:
        h = h @ W.T + b
        h = (h - r_mean) / jnp.sqrt(r_var + BN_EPS) * gamma + beta
        h = jnp.maximum(h, 0.0)
    return h


if __name__ == "__main__":
    key = jax.random.PRNGKey(0)
    kx, kp = jax.random.split(key)
    N = 4
    x = jax.random.normal(kx, (N, 7, 1), jnp.float32)   # PyTorch NCL input
    params = init_params(kp)

    out = feature_forward(x, params)
    out = jax.block_until_ready(out)

    ref = feature_reference(x, params)
    # bf16 weights/activations -> loosened tolerance vs the f32 reference.
    np.testing.assert_allclose(np.asarray(out), np.asarray(ref),
                               rtol=5e-2, atol=5e-2)
    assert out.shape == (N, 9)
    print("KERNEL_OK")
</pallas_src>

<mosaic_0001>
module attributes {stable_mosaic.version = 11 : i64} {
  func.func @feature_kernel(%arg0: i32, %arg1: memref<256x128xbf16, #tpu.memory_space<vmem>>, %arg2: memref<5x256x256xbf16, #tpu.memory_space<vmem>>, %arg3: memref<256x128xbf16, #tpu.memory_space<vmem>>) attributes {dimension_semantics = [#tpu.dimension_semantics<parallel>], iteration_bounds = array<i64: 2>, scalar_prefetch = 0 : i64, scratch_operands = 0 : i64, tpu.core_type = #tpu.core_type<tc>, window_params = [{transform_indices = @transform_0, window_bounds = array<i64: 256, 128>}, {pipeline_mode = #tpu.pipeline_mode<synchronous>, transform_indices = @transform_1, window_bounds = array<i64: 5, 256, 256>}, {transform_indices = @transform_2, window_bounds = array<i64: 256, 128>}]} {
    %c0 = arith.constant 0 : index
    %c0_0 = arith.constant 0 : index
    %0 = vector.load %arg1[%c0, %c0_0] : memref<256x128xbf16, #tpu.memory_space<vmem>>, vector<256x128xbf16>
    %c0_1 = arith.constant 0 : index
    %c0_2 = arith.constant 0 : index
    %c0_3 = arith.constant 0 : index
    %1 = vector.load %arg2[%c0_1, %c0_2, %c0_3] : memref<5x256x256xbf16, #tpu.memory_space<vmem>>, vector<1x256x256xbf16>
    %2 = vector.shape_cast %1 : vector<1x256x256xbf16> to vector<256x256xbf16>
    %cst = arith.constant dense<0.000000e+00> : vector<256x128xf32>
    %3 = tpu.matmul %2, %0, %cst {dimension_numbers = #tpu.dot_dimension_numbers<[1], [0], [0], [1], [0, 0, 1, 1], [], []>} : vector<256x256xbf16>, vector<256x128xbf16>, vector<256x128xf32> -> vector<256x128xf32>
    %cst_4 = arith.constant 0.000000e+00 : f32
    %4 = vector.broadcast %cst_4 : f32 to vector<256x128xf32>
    %5 = arith.maximumf %3, %4 : vector<256x128xf32>
    %6 = arith.truncf %5 : vector<256x128xf32> to vector<256x128xbf16>
    %c1 = arith.constant 1 : index
    %c0_5 = arith.constant 0 : index
    %c0_6 = arith.constant 0 : index
    %7 = vector.load %arg2[%c1, %c0_5, %c0_6] : memref<5x256x256xbf16, #tpu.memory_space<vmem>>, vector<1x256x256xbf16>
    %8 = vector.shape_cast %7 : vector<1x256x256xbf16> to vector<256x256xbf16>
    %cst_7 = arith.constant dense<0.000000e+00> : vector<256x128xf32>
    %9 = tpu.matmul %8, %6, %cst_7 {dimension_numbers = #tpu.dot_dimension_numbers<[1], [0], [0], [1], [0, 0, 1, 1], [], []>} : vector<256x256xbf16>, vector<256x128xbf16>, vector<256x128xf32> -> vector<256x128xf32>
    %cst_8 = arith.constant 0.000000e+00 : f32
    %10 = vector.broadcast %cst_8 : f32 to vector<256x128xf32>
    %11 = arith.maximumf %9, %10 : vector<256x128xf32>
    %12 = arith.truncf %11 : vector<256x128xf32> to vector<256x128xbf16>
    %c2 = arith.constant 2 : index
    %c0_9 = arith.constant 0 : index
    %c0_10 = arith.constant 0 : index
    %13 = vector.load %arg2[%c2, %c0_9, %c0_10] : memref<5x256x256xbf16, #tpu.memory_space<vmem>>, vector<1x256x256xbf16>
    %14 = vector.shape_cast %13 : vector<1x256x256xbf16> to vector<256x256xbf16>
    %cst_11 = arith.constant dense<0.000000e+00> : vector<256x128xf32>
    %15 = tpu.matmul %14, %12, %cst_11 {dimension_numbers = #tpu.dot_dimension_numbers<[1], [0], [0], [1], [0, 0, 1, 1], [], []>} : vector<256x256xbf16>, vector<256x128xbf16>, vector<256x128xf32> -> vector<256x128xf32>
    %cst_12 = arith.constant 0.000000e+00 : f32
    %16 = vector.broadcast %cst_12 : f32 to vector<256x128xf32>
    %17 = arith.maximumf %15, %16 : vector<256x128xf32>
    %18 = arith.truncf %17 : vector<256x128xf32> to vector<256x128xbf16>
    %c3 = arith.constant 3 : index
    %c0_13 = arith.constant 0 : index
    %c0_14 = arith.constant 0 : index
    %19 = vector.load %arg2[%c3, %c0_13, %c0_14] : memref<5x256x256xbf16, #tpu.memory_space<vmem>>, vector<1x256x256xbf16>
    %20 = vector.shape_cast %19 : vector<1x256x256xbf16> to vector<256x256xbf16>
    %cst_15 = arith.constant dense<0.000000e+00> : vector<256x128xf32>
    %21 = tpu.matmul %20, %18, %cst_15 {dimension_numbers = #tpu.dot_dimension_numbers<[1], [0], [0], [1], [0, 0, 1, 1], [], []>} : vector<256x256xbf16>, vector<256x128xbf16>, vector<256x128xf32> -> vector<256x128xf32>
    %cst_16 = arith.constant 0.000000e+00 : f32
    %22 = vector.broadcast %cst_16 : f32 to vector<256x128xf32>
    %23 = arith.maximumf %21, %22 : vector<256x128xf32>
    %24 = arith.truncf %23 : vector<256x128xf32> to vector<256x128xbf16>
    %c4 = arith.constant 4 : index
    %c0_17 = arith.constant 0 : index
    %c0_18 = arith.constant 0 : index
    %25 = vector.load %arg2[%c4, %c0_17, %c0_18] : memref<5x256x256xbf16, #tpu.memory_space<vmem>>, vector<1x256x256xbf16>
    %26 = vector.shape_cast %25 : vector<1x256x256xbf16> to vector<256x256xbf16>
    %cst_19 = arith.constant dense<0.000000e+00> : vector<256x128xf32>
    %27 = tpu.matmul %26, %24, %cst_19 {dimension_numbers = #tpu.dot_dimension_numbers<[1], [0], [0], [1], [0, 0, 1, 1], [], []>} : vector<256x256xbf16>, vector<256x128xbf16>, vector<256x128xf32> -> vector<256x128xf32>
    %cst_20 = arith.constant 0.000000e+00 : f32
    %28 = vector.broadcast %cst_20 : f32 to vector<256x128xf32>
    %29 = arith.maximumf %27, %28 : vector<256x128xf32>
    %30 = arith.truncf %29 : vector<256x128xf32> to vector<256x128xbf16>
    %c0_21 = arith.constant 0 : index
    %c0_22 = arith.constant 0 : index
    %31 = vector.load %arg3[%c0_21, %c0_22] : memref<256x128xbf16, #tpu.memory_space<vmem>>, vector<256x128xbf16>
    tpu.vector_store %arg3[%c0_21, %c0_22], %30 {strides = array<i32>} : memref<256x128xbf16, #tpu.memory_space<vmem>>, vector<256x128xbf16>,
    return
  }
  func.func @transform_0(%arg0: i32) -> (i32, i32) {
    %c0_i32 = arith.constant 0 : i32
    %c0_i32_0 = arith.constant 0 : i32
    return %c0_i32, %arg0 : i32, i32
  }
  func.func @transform_1(%arg0: i32) -> (i32, i32, i32) {
    %c0_i32 = arith.constant 0 : i32
    %c0_i32_0 = arith.constant 0 : i32
    %c0_i32_1 = arith.constant 0 : i32
    %c0_i32_2 = arith.constant 0 : i32
    return %c0_i32, %c0_i32_0, %c0_i32_1 : i32, i32, i32
  }
  func.func @transform_2(%arg0: i32) -> (i32, i32) {
    %c0_i32 = arith.constant 0 : i32
    %c0_i32_0 = arith.constant 0 : i32
    return %c0_i32, %arg0 : i32, i32
  }
}

</mosaic_0001>

<llo_original>
// kernel: tpu_custom_call.1
$region0: #{tpu_custom_call.1}
  #allocation0 [shape = 'u32[]', space=smem, size = 0x4, offset = 0x4, fixed_abs, tag = 'smem constant byte address 0x4 - core index']
  #allocation1 [shape = 'u32[144,128]{1,0:T(1,128)}', space=vmem, size = 0x12000, scoped, tag = 'internal scratch']
  %s0 = inlined_call_operand.hbm [shape: bf16[256,256], index: 0, kind: input, shape index: {}]
  %s1 = inlined_call_operand.hbm [shape: bf16[5,256,256], index: 1, kind: input, shape index: {}]
  %s2 = inlined_call_operand.hbm [shape: bf16[256,256], index: 2, kind: output, shape index: {}]
  %s3 = sld [smem:[#allocation0]]
  $region49: #{tpu_custom_call.1} parent=0
    _
  %s5 = ssub.s32 1, %s3
  %s6 = scalar_select 0, %s5, %s3
  $region1: #{tpu_custom_call.1} parent=0
    #allocation2 [shape = 'u8[131072]{0}', space=vmem, size = 0x20000, scoped, tag = 'input window, operand 0']
    #allocation3 [shape = 's32[2]{0}', space=sflag, size = 0x8, scoped, tag = 'scoped memory for tpu_custom_call.1']
    #allocation4 [shape = 's32[2]{0}', space=sflag, size = 0x8, scoped, tag = 'scoped memory for tpu_custom_call.1']
    #allocation5 [shape = 'u8[655360]{0}', space=vmem, size = 0xa0000, scoped, tag = 'input window, operand 1, single buffered']
    #allocation6 [shape = 's32[1]{0}', space=sflag, size = 0x4, scoped, tag = 'scoped memory for tpu_custom_call.1']
    #allocation7 [shape = 'u8[131072]{0}', space=vmem, size = 0x20000, scoped, tag = 'output window, operand 0']
    %7 = vsyncpa [#allocation3], 0
    %s8 = scalar_lea.sflag [#allocation3], 1
    %9 = vsyncpa %s8, 0
    %10 = vsyncpa [#allocation6], 0
    %11 = vsyncpa [#allocation4], 0
    %s12 = scalar_lea.sflag [#allocation4], 1
    %13 = vsyncpa %s12, 0
    loop: start=0, step=1, limit=4
    $region2: #{tpu_custom_call.1} parent=1 // loop_pre_header
      _
    $region3: #{tpu_custom_call.1} parent=1 // loop_header
      %s15 = sphi 0, %s19
      %p16 = scmp.ge.s32.totalorder %s15, 4
      %s25 = sphi 0, %s27
      %s28 = sphi 0, %s25
      %s29 = sphi 0, %s28
      %s45 = sphi 0, %s29
      %s49 = sphi 0, %s49
      %s51 = sphi 0, %s49
      %s52 = sphi 0, %s51
      %s66 = sphi 0, %s52
      %s72 = sphi 0, %s74
      %s75 = sphi 0, %s72
      %s76 = sphi 0, %s75
      %s92 = sphi 0, %s76
    $region4: #{tpu_custom_call.1} parent=1 // loop_header_branch
      %18 = sbr.rel (%p16) target = $region8
    $region5: #{tpu_custom_call.1} parent=1 // loop_body
      %s20 = ssub.s32 %s15, 1
      %s21 = ssub.s32 %s15, 2
      %s22 = sadd.s32 %s15, 1
      %s23 = ssub.s32 %s15, %s22
      %p24 = scmp.eq.s32.totalorder %s23, 0
      %s26 = sadd.s32 %s25, 1
      %s27 = scalar_select %p24, %s25, %s26
      %p30 = pneg %p24
      %p31 = scmp.eq.s32.totalorder %s15, 1
      %p32 = por %p30, %p31
      %p33 = scmp.ne.s32.totalorder %s25, %s28
      %p34 = scmp.eq.s32.totalorder %s15, 0
      %p35 = por %p33, %p34
      %p36 = scmp.ne.s32.totalorder %s25, %s28
      %p37 = scmp.eq.s32.totalorder %s20, 1
      %p38 = por %p36, %p37
      %p39 = scmp.ne.s32.totalorder %s28, %s29
      %p40 = scmp.eq.s32.totalorder %s20, 0
      %p41 = por %p39, %p40
      %p42 = scmp.ne.s32.totalorder %s28, %s29
      %p43 = scmp.eq.s32.totalorder %s21, 1
      %p44 = por %p42, %p43
      %p46 = scmp.ne.s32.totalorder %s29, %s45
      %p47 = scmp.eq.s32.totalorder %s21, 0
      %p48 = por %p46, %p47
      %s50 = sadd.s32 %s49, 1
      %p53 = scmp.eq.s32.totalorder %s15, 1
      %p54 = scmp.ne.s32.totalorder %s49, %s51
      %p55 = scmp.eq.s32.totalorder %s15, 0
      %p56 = por %p54, %p55
      %p57 = scmp.ne.s32.totalorder %s49, %s51
      %p58 = scmp.eq.s32.totalorder %s20, 1
      %p59 = por %p57, %p58
      %p60 = scmp.ne.s32.totalorder %s51, %s52
      %p61 = scmp.eq.s32.totalorder %s20, 0
      %p62 = por %p60, %p61
      %p63 = scmp.ne.s32.totalorder %s51, %s52
      %p64 = scmp.eq.s32.totalorder %s21, 1
      %p65 = por %p63, %p64
      %p67 = scmp.ne.s32.totalorder %s52, %s66
      %p68 = scmp.eq.s32.totalorder %s21, 0
      %p69 = por %p67, %p68
      %s70 = ssub.s32 %s15, %s22
      %p71 = scmp.eq.s32.totalorder %s70, 0
      %s73 = sadd.s32 %s72, 1
      %s74 = scalar_select %p71, %s72, %s73
      %p77 = pneg %p71
      %p78 = scmp.eq.s32.totalorder %s15, 1
      %p79 = por %p77, %p78
      %p80 = scmp.ne.s32.totalorder %s72, %s75
      %p81 = scmp.eq.s32.totalorder %s15, 0
      %p82 = por %p80, %p81
      %p83 = scmp.ne.s32.totalorder %s72, %s75
      %p84 = scmp.eq.s32.totalorder %s20, 1
      %p85 = por %p83, %p84
      %p86 = scmp.ne.s32.totalorder %s75, %s76
      %p87 = scmp.eq.s32.totalorder %s20, 0
      %p88 = por %p86, %p87
      %p89 = scmp.ne.s32.totalorder %s75, %s76
      %p90 = scmp.eq.s32.totalorder %s21, 1
      %p91 = por %p89, %p90
      %p93 = scmp.ne.s32.totalorder %s76, %s92
      %p94 = scmp.eq.s32.totalorder %s21, 0
      %p95 = por %p93, %p94
      %p96 = scmp.le.s32.totalorder 1, %s15
      %p97 = scmp.lt.s32.totalorder %s15, 3
      %p98 = pnand %p96, %p97
      %p99 = pneg %p98
      // Predicated region
      $region9: #{tpu_custom_call.1} parent=5 // pred_check
        _
      $region10: #{tpu_custom_call.1} parent=5 // pred_check_branch
        %101 = sbr.rel (%p98) target = $region12
      $region11: #{tpu_custom_call.1} parent=5 // pred_region
        %s102 = ssub.s32 %s15, 1
        // Predicated region
        $region13: #{tpu_custom_call.1} parent=11 // pred_check
          %p103 = pneg %p62
        $region14: #{tpu_custom_call.1} parent=11 // pred_check_branch
          %105 = sbr.rel (%p103) target = $region16
        $region15: #{tpu_custom_call.1} parent=11 // pred_region
          %s107 = ssub.s32 20480, 20480
          %108 = vsyncadd [#allocation6], %s107
          %s109 = sshll.u32 [#allocation5], 4
          %s110 = int_to_ptr.vmem [resolvable:$true] %s109
          %115 = dma.hbm_to_vmem [thread:$0]  %s1, 20480, %s110, [#allocation6], 128, 128, 8
        $region16: #{tpu_custom_call.1} parent=11 // pred_fallthru
          _
      $region12: #{tpu_custom_call.1} parent=5 // pred_fallthru
        _
      %p116 = scmp.lt.s32.totalorder %s15, 2
      // Predicated region
      $region17: #{tpu_custom_call.1} parent=5 // pred_check
        %p117 = pneg %p116
      $region18: #{tpu_custom_call.1} parent=5 // pred_check_branch
        %119 = sbr.rel (%p117) target = $region20
      $region19: #{tpu_custom_call.1} parent=5 // pred_region
        // Predicated region
        $region21: #{tpu_custom_call.1} parent=19 // pred_check
          %p120 = pneg %p35
        $region22: #{tpu_custom_call.1} parent=19 // pred_check_branch
          %122 = sbr.rel (%p120) target = $region24
        $region23: #{tpu_custom_call.1} parent=19 // pred_region
          %s123 = sand.u32 %s25, 1
          %s124 = scalar_lea.sflag [#allocation3], %s123
          %s125 = sand.u32 %s25, 1
          %s126 = smul.addr %s125, 128
          %s127 = scalar_lea.vmem [#allocation2], %s126
          %s129 = ssub.s32 2048, 2048
          %130 = vsyncadd %s124, %s129
          %s131 = smul.addr %s15, 64
          %s132 = scalar_lea.hbm %s0, %s131
          %s133 = sshll.u32 %s127, 4
          %s134 = int_to_ptr.vmem [resolvable:$true] %s133
          %139 = dma.hbm_to_vmem [thread:$0]  %s132, 2048, %s134, %s124, 128, 64, 4
        $region24: #{tpu_custom_call.1} parent=19 // pred_fallthru
          _
      $region20: #{tpu_custom_call.1} parent=5 // pred_fallthru
        _
      %p140 = scmp.le.s32.totalorder 1, %s15
      %p141 = scmp.lt.s32.totalorder %s15, 3
      %p142 = pnand %p140, %p141
      %p143 = pneg %p142
      // Predicated region
      $region25: #{tpu_custom_call.1} parent=5 // pred_check
        _
      $region26: #{tpu_custom_call.1} parent=5 // pred_check_branch
        %145 = sbr.rel (%p142) target = $region28
      $region27: #{tpu_custom_call.1} parent=5 // pred_region
        %s146 = ssub.s32 %s15, 1
        %s147 = sand.u32 %s28, 1
        %s148 = scalar_lea.sflag [#allocation3], %s147
        %s149 = sand.u32 %s28, 1
        %s150 = smul.addr %s149, 128
        %s151 = scalar_lea.vmem [#allocation2], %s150
        // Predicated region
        $region29: #{tpu_custom_call.1} parent=27 // pred_check
          %p152 = pneg %p41
        $region30: #{tpu_custom_call.1} parent=27 // pred_check_branch
          %154 = sbr.rel (%p152) target = $region32
        $region31: #{tpu_custom_call.1} parent=27 // pred_region
          %155 = dma.done %s148, 2048
        $region32: #{tpu_custom_call.1} parent=27 // pred_fallthru
          _
        // Predicated region
        $region33: #{tpu_custom_call.1} parent=27 // pred_check
          %p156 = pneg %p62
        $region34: #{tpu_custom_call.1} parent=27 // pred_check_branch
          %158 = sbr.rel (%p156) target = $region36
        $region35: #{tpu_custom_call.1} parent=27 // pred_region
          %159 = dma.done [#allocation6], 20480
        $region36: #{tpu_custom_call.1} parent=27 // pred_fallthru
          _
        %s160 = sand.u32 %s28, 1
        %s161 = scalar_lea.sflag [#allocation3], %s160
        %s162 = sand.u32 %s28, 1
        %s163 = smul.addr %s162, 128
        %s164 = scalar_lea.vmem [#allocation2], %s163
        %p165 = pneg %p41
        %p166 = pneg %p38
        %p167 = pneg %p62
        %p168 = pneg %p59
        %p169 = pneg %p88
        %p170 = pneg %p85
        %s171 = sand.u32 %s75, 1
        %s172 = scalar_lea.sflag [#allocation4], %s171
        %s173 = sand.u32 %s75, 1
        %s174 = smul.addr %s173, 128
        %s175 = scalar_lea.vmem [#allocation7], %s174
        %v177 = vld [vmem:[%s151] sm:$0xf]
        %v178 = vld [vmem:[%s151 + $0x4] sm:$0xf]
        %v179 = vld [vmem:[%s151 + $0x8] sm:$0xf]
        %v180 = vld [vmem:[%s151 + $0xc] sm:$0xf]
        %v181 = vld [vmem:[%s151 + $0x10] sm:$0xf]
        %v182 = vld [vmem:[%s151 + $0x14] sm:$0xf]
        %v183 = vld [vmem:[%s151 + $0x18] sm:$0xf]
        %v184 = vld [vmem:[%s151 + $0x1c] sm:$0xf]
        %v185 = vld [vmem:[%s151 + $0x20] sm:$0xf]
        %v186 = vld [vmem:[%s151 + $0x24] sm:$0xf]
        %v187 = vld [vmem:[%s151 + $0x28] sm:$0xf]
        %v188 = vld [vmem:[%s151 + $0x2c] sm:$0xf]
        %v189 = vld [vmem:[%s151 + $0x30] sm:$0xf]
        %v190 = vld [vmem:[%s151 + $0x34] sm:$0xf]
        %v191 = vld [vmem:[%s151 + $0x38] sm:$0xf]
        %v192 = vld [vmem:[%s151 + $0x3c] sm:$0xf]
        %v193 = vld [vmem:[%s151 + $0x40] sm:$0xf]
        %v194 = vld [vmem:[%s151 + $0x44] sm:$0xf]
        %v195 = vld [vmem:[%s151 + $0x48] sm:$0xf]
        %v196 = vld [vmem:[%s151 + $0x4c] sm:$0xf]
        %v197 = vld [vmem:[%s151 + $0x50] sm:$0xf]
        %v198 = vld [vmem:[%s151 + $0x54] sm:$0xf]
        %v199 = vld [vmem:[%s151 + $0x58] sm:$0xf]
        %v200 = vld [vmem:[%s151 + $0x5c] sm:$0xf]
        %v201 = vld [vmem:[%s151 + $0x60] sm:$0xf]
        %v202 = vld [vmem:[%s151 + $0x64] sm:$0xf]
        %v203 = vld [vmem:[%s151 + $0x68] sm:$0xf]
        %v204 = vld [vmem:[%s151 + $0x6c] sm:$0xf]
        %v205 = vld [vmem:[%s151 + $0x70] sm:$0xf]
        %v206 = vld [vmem:[%s151 + $0x74] sm:$0xf]
        %v207 = vld [vmem:[%s151 + $0x78] sm:$0xf]
        %v208 = vld [vmem:[%s151 + $0x7c] sm:$0xf]
        %v209 = vld [vmem:[#allocation5] sm:$0xff]
        %v210 = vld [vmem:[#allocation5 + $0x8] sm:$0xff]
        %v211 = vld [vmem:[#allocation5 + $0x10] sm:$0xff]
        %v212 = vld [vmem:[#allocation5 + $0x18] sm:$0xff]
        %v213 = vld [vmem:[#allocation5 + $0x20] sm:$0xff]
        %v214 = vld [vmem:[#allocation5 + $0x28] sm:$0xff]
        %v215 = vld [vmem:[#allocation5 + $0x30] sm:$0xff]
        %v216 = vld [vmem:[#allocation5 + $0x38] sm:$0xff]
        %v217 = vld [vmem:[#allocation5 + $0x40] sm:$0xff]
        %v218 = vld [vmem:[#allocation5 + $0x48] sm:$0xff]
        %v219 = vld [vmem:[#allocation5 + $0x50] sm:$0xff]
        %v220 = vld [vmem:[#allocation5 + $0x58] sm:$0xff]
        %v221 = vld [vmem:[#allocation5 + $0x60] sm:$0xff]
        %v222 = vld [vmem:[#allocation5 + $0x68] sm:$0xff]
        %v223 = vld [vmem:[#allocation5 + $0x70] sm:$0xff]
        %v224 = vld [vmem:[#allocation5 + $0x78] sm:$0xff]
        %v225 = vld [vmem:[#allocation5 + $0x80] sm:$0xff]
        %v226 = vld [vmem:[#allocation5 + $0x88] sm:$0xff]
        %v227 = vld [vmem:[#allocation5 + $0x90] sm:$0xff]
        %v228 = vld [vmem:[#allocation5 + $0x98] sm:$0xff]
        %v229 = vld [vmem:[#allocation5 + $0xa0] sm:$0xff]
        %v230 = vld [vmem:[#allocation5 + $0xa8] sm:$0xff]
        %v231 = vld [vmem:[#allocation5 + $0xb0] sm:$0xff]
        %v232 = vld [vmem:[#allocation5 + $0xb8] sm:$0xff]
        %v233 = vld [vmem:[#allocation5 + $0xc0] sm:$0xff]
        %v234 = vld [vmem:[#allocation5 + $0xc8] sm:$0xff]
        %v235 = vld [vmem:[#allocation5 + $0xd0] sm:$0xff]
        %v236 = vld [vmem:[#allocation5 + $0xd8] sm:$0xff]
        %v237 = vld [vmem:[#allocation5 + $0xe0] sm:$0xff]
        %v238 = vld [vmem:[#allocation5 + $0xe8] sm:$0xff]
        %v239 = vld [vmem:[#allocation5 + $0xf0] sm:$0xff]
        %v240 = vld [vmem:[#allocation5 + $0xf8] sm:$0xff]
        %v273 = vunpack.c.l.b16 %v209
        %v274 = vunpack.c.h.b16 %v209
        %v275 = vunpack.c.l.b16 %v210
        %v276 = vunpack.c.h.b16 %v210
        %v277 = vunpack.c.l.b16 %v211
        %v278 = vunpack.c.h.b16 %v211
        %v279 = vunpack.c.l.b16 %v212
        %v280 = vunpack.c.h.b16 %v212
        %v281 = vunpack.c.l.b16 %v213
        %v282 = vunpack.c.h.b16 %v213
        %v283 = vunpack.c.l.b16 %v214
        %v284 = vunpack.c.h.b16 %v214
        %v285 = vunpack.c.l.b16 %v215
        %v286 = vunpack.c.h.b16 %v215
        %v287 = vunpack.c.l.b16 %v216
        %v288 = vunpack.c.h.b16 %v216
        %v289 = vunpack.c.l.b16 %v217
        %v290 = vunpack.c.h.b16 %v217
        %v291 = vunpack.c.l.b16 %v218
        %v292 = vunpack.c.h.b16 %v218
        %v293 = vunpack.c.l.b16 %v219
        %v294 = vunpack.c.h.b16 %v219
        %v295 = vunpack.c.l.b16 %v220
        %v296 = vunpack.c.h.b16 %v220
        %v297 = vunpack.c.l.b16 %v221
        %v298 = vunpack.c.h.b16 %v221
        %v299 = vunpack.c.l.b16 %v222
        %v300 = vunpack.c.h.b16 %v222
        %v301 = vunpack.c.l.b16 %v223
        %v302 = vunpack.c.h.b16 %v223
        %v303 = vunpack.c.l.b16 %v224
        %v304 = vunpack.c.h.b16 %v224
        %v305 = vunpack.c.l.b16 %v225
        %v306 = vunpack.c.h.b16 %v225
        %v307 = vunpack.c.l.b16 %v226
        %v308 = vunpack.c.h.b16 %v226
        %v309 = vunpack.c.l.b16 %v227
        %v310 = vunpack.c.h.b16 %v227
        %v311 = vunpack.c.l.b16 %v228
        %v312 = vunpack.c.h.b16 %v228
        %v313 = vunpack.c.l.b16 %v229
        %v314 = vunpack.c.h.b16 %v229
        %v315 = vunpack.c.l.b16 %v230
        %v316 = vunpack.c.h.b16 %v230
        %v317 = vunpack.c.l.b16 %v231
        %v318 = vunpack.c.h.b16 %v231
        %v319 = vunpack.c.l.b16 %v232
        %v320 = vunpack.c.h.b16 %v232
        %v321 = vunpack.c.l.b16 %v233
        %v322 = vunpack.c.h.b16 %v233
        %v323 = vunpack.c.l.b16 %v234
        %v324 = vunpack.c.h.b16 %v234
        %v325 = vunpack.c.l.b16 %v235
        %v326 = vunpack.c.h.b16 %v235
        %v327 = vunpack.c.l.b16 %v236
        %v328 = vunpack.c.h.b16 %v236
        %v329 = vunpack.c.l.b16 %v237
        %v330 = vunpack.c.h.b16 %v237
        %v331 = vunpack.c.l.b16 %v238
        %v332 = vunpack.c.h.b16 %v238
        %v333 = vunpack.c.l.b16 %v239
        %v334 = vunpack.c.h.b16 %v239
        %v335 = vunpack.c.l.b16 %v240
        %v336 = vunpack.c.h.b16 %v240
        %v337 = vpack.c.b16 %v275, %v273
        %v338 = vpack.c.b16 %v276, %v274
        %v339 = vpack.c.b16 %v279, %v277
        %v340 = vpack.c.b16 %v280, %v278
        %v341 = vpack.c.b16 %v283, %v281
        %v342 = vpack.c.b16 %v284, %v282
        %v343 = vpack.c.b16 %v287, %v285
        %v344 = vpack.c.b16 %v288, %v286
        %v345 = vpack.c.b16 %v291, %v289
        %v346 = vpack.c.b16 %v292, %v290
        %v347 = vpack.c.b16 %v295, %v293
        %v348 = vpack.c.b16 %v296, %v294
        %v349 = vpack.c.b16 %v299, %v297
        %v350 = vpack.c.b16 %v300, %v298
        %v351 = vpack.c.b16 %v303, %v301
        %v352 = vpack.c.b16 %v304, %v302
        %v353 = vpack.c.b16 %v307, %v305
        %v354 = vpack.c.b16 %v308, %v306
        %v355 = vpack.c.b16 %v311, %v309
        %v356 = vpack.c.b16 %v312, %v310
        %v357 = vpack.c.b16 %v315, %v313
        %v358 = vpack.c.b16 %v316, %v314
        %v359 = vpack.c.b16 %v319, %v317
        %v360 = vpack.c.b16 %v320, %v318
        %v361 = vpack.c.b16 %v323, %v321
        %v362 = vpack.c.b16 %v324, %v322
        %v363 = vpack.c.b16 %v327, %v325
        %v364 = vpack.c.b16 %v328, %v326
        %v365 = vpack.c.b16 %v331, %v329
        %v366 = vpack.c.b16 %v332, %v330
        %v367 = vpack.c.b16 %v335, %v333
        %v368 = vpack.c.b16 %v336, %v334
        %v433 = vunpack.c.l.b16 %v177
        %v434 = vunpack.c.l.b16 %v178
        %v435 = vunpack.c.l.b16 %v179
        %v436 = vunpack.c.l.b16 %v180
        %v437 = vunpack.c.l.b16 %v181
        %v438 = vunpack.c.l.b16 %v182
        %v439 = vunpack.c.l.b16 %v183
        %v440 = vunpack.c.l.b16 %v184
        %v441 = vunpack.c.l.b16 %v185
        %v442 = vunpack.c.l.b16 %v186
        %v443 = vunpack.c.l.b16 %v187
        %v444 = vunpack.c.l.b16 %v188
        %v445 = vunpack.c.l.b16 %v189
        %v446 = vunpack.c.l.b16 %v190
        %v447 = vunpack.c.l.b16 %v191
        %v448 = vunpack.c.l.b16 %v192
        %v449 = vunpack.c.l.b16 %v193
        %v450 = vunpack.c.l.b16 %v194
        %v451 = vunpack.c.l.b16 %v195
        %v452 = vunpack.c.l.b16 %v196
        %v453 = vunpack.c.l.b16 %v197
        %v454 = vunpack.c.l.b16 %v198
        %v455 = vunpack.c.l.b16 %v199
        %v456 = vunpack.c.l.b16 %v200
        %v457 = vunpack.c.l.b16 %v201
        %v458 = vunpack.c.l.b16 %v202
        %v459 = vunpack.c.l.b16 %v203
        %v460 = vunpack.c.l.b16 %v204
        %v461 = vunpack.c.l.b16 %v205
        %v462 = vunpack.c.l.b16 %v206
        %v463 = vunpack.c.l.b16 %v207
        %v464 = vunpack.c.l.b16 %v208
        %v465 = vpack.c.b16 %v434, %v433
        %v466 = vpack.c.b16 %v436, %v435
        %v467 = vpack.c.b16 %v438, %v437
        %v468 = vpack.c.b16 %v440, %v439
        %v469 = vpack.c.b16 %v442, %v441
        %v470 = vpack.c.b16 %v444, %v443
        %v471 = vpack.c.b16 %v446, %v445
        %v472 = vpack.c.b16 %v448, %v447
        %v473 = vpack.c.b16 %v450, %v449
        %v474 = vpack.c.b16 %v452, %v451
        %v475 = vpack.c.b16 %v454, %v453
        %v476 = vpack.c.b16 %v456, %v455
        %v477 = vpack.c.b16 %v458, %v457
        %v478 = vpack.c.b16 %v460, %v459
        %v479 = vpack.c.b16 %v462, %v461
        %v480 = vpack.c.b16 %v464, %v463
        %497 = vmatprep.subr.bf16.mxu0 0
        %498 = vmatpush1.bf16.msra.mxu0 %v465
        %499 = vmatprep.subr.bf16.mxu0 0
        %500 = vmatpush1.bf16.msra.mxu0 %v466
        %501 = vmatprep.subr.bf16.mxu0 0
        %502 = vmatpush1.bf16.msra.mxu0 %v467
        %503 = vmatprep.subr.bf16.mxu0 0
        %504 = vmatpush1.bf16.msra.mxu0 %v468
        %505 = vmatprep.subr.bf16.mxu0 0
        %506 = vmatpush1.bf16.msra.mxu0 %v469
        %507 = vmatprep.subr.bf16.mxu0 0
        %508 = vmatpush1.bf16.msra.mxu0 %v470
        %509 = vmatprep.subr.bf16.mxu0 0
        %510 = vmatpush1.bf16.msra.mxu0 %v471
        %511 = vmatprep.subr.bf16.mxu0 0
        %512 = vmatpush1.bf16.msra.mxu0 %v472
        %513 = vmatprep.subr.bf16.mxu0 0
        %514 = vmatpush1.bf16.msra.mxu0 %v473
        %515 = vmatprep.subr.bf16.mxu0 0
        %516 = vmatpush1.bf16.msra.mxu0 %v474
        %517 = vmatprep.subr.bf16.mxu0 0
        %518 = vmatpush1.bf16.msra.mxu0 %v475
        %519 = vmatprep.subr.bf16.mxu0 0
        %520 = vmatpush1.bf16.msra.mxu0 %v476
        %521 = vmatprep.subr.bf16.mxu0 0
        %522 = vmatpush1.bf16.msra.mxu0 %v477
        %523 = vmatprep.subr.bf16.mxu0 0
        %524 = vmatpush1.bf16.msra.mxu0 %v478
        %525 = vmatprep.subr.bf16.mxu0 0
        %526 = vmatpush1.bf16.msra.mxu0 %v479
        %527 = vmatprep.subr.bf16.mxu0 0
        %528 = vmatpush1.bf16.msra.mxu0 %v480
        %529 = vmatprep.mubr.bf16.mxu0 %v338
        %530 = vmatmul.mubr.bf16.gmra.mrb[0].mxu0 %v337
        %v531 = vpop.f32.mrb[0].mxu0
        %v532 = vadd.f32 0.0, %v531
        %v533 = vpop.f32.mrb[0].mxu0
        %v534 = vpop.f32.mrb[0].mxu0
        %v535 = vadd.f32 0.0, %v534
        %v536 = vpop.f32.mrb[0].mxu0
        %537 = vmatprep.mubr.bf16.mxu0 %v340
        %538 = vmatmul.mubr.bf16.gmra.mrb[0].mxu0 %v339
        %v539 = vpop.f32.mrb[0].mxu0
        %v540 = vadd.f32 0.0, %v539
        %v541 = vpop.f32.mrb[0].mxu0
        %v542 = vpop.f32.mrb[0].mxu0
        %v543 = vadd.f32 0.0, %v542
        %v544 = vpop.f32.mrb[0].mxu0
        %545 = vmatprep.mubr.bf16.mxu0 %v342
        %546 = vmatmul.mubr.bf16.gmra.mrb[0].mxu0 %v341
        %v547 = vpop.f32.mrb[0].mxu0
        %v548 = vadd.f32 0.0, %v547
        %v549 = vpop.f32.mrb[0].mxu0
        %v550 = vpop.f32.mrb[0].mxu0
        %v551 = vadd.f32 0.0, %v550
        %v552 = vpop.f32.mrb[0].mxu0
        %553 = vmatprep.mubr.bf16.mxu0 %v344
        %554 = vmatmul.mubr.bf16.gmra.mrb[0].mxu0 %v343
        %v555 = vpop.f32.mrb[0].mxu0
        %v556 = vadd.f32 0.0, %v555
        %v557 = vpop.f32.mrb[0].mxu0
        %v558 = vpop.f32.mrb[0].mxu0
        %v559 = vadd.f32 0.0, %v558
        %v560 = vpop.f32.mrb[0].mxu0
        %561 = vmatprep.mubr.bf16.mxu0 %v346
        %562 = vmatmul.mubr.bf16.gmra.mrb[0].mxu0 %v345
        %v563 = vpop.f32.mrb[0].mxu0
        %v564 = vadd.f32 0.0, %v563
        %v565 = vpop.f32.mrb[0].mxu0
        %v566 = vpop.f32.mrb[0].mxu0
        %v567 = vadd.f32 0.0, %v566
        %v568 = vpop.f32.mrb[0].mxu0
        %569 = vmatprep.mubr.bf16.mxu0 %v348
        %570 = vmatmul.mubr.bf16.gmra.mrb[0].mxu0 %v347
        %v571 = vpop.f32.mrb[0].mxu0
        %v572 = vadd.f32 0.0, %v571
        %v573 = vpop.f32.mrb[0].mxu0
        %v574 = vpop.f32.mrb[0].mxu0
        %v575 = vadd.f32 0.0, %v574
        %v576 = vpop.f32.mrb[0].mxu0
        %577 = vmatprep.mubr.bf16.mxu0 %v350
        %578 = vmatmul.mubr.bf16.gmra.mrb[0].mxu0 %v349
        %v579 = vpop.f32.mrb[0].mxu0
        %v580 = vadd.f32 0.0, %v579
        %v581 = vpop.f32.mrb[0].mxu0
        %v582 = vpop.f32.mrb[0].mxu0
        %v583 = vadd.f32 0.0, %v582
        %v584 = vpop.f32.mrb[0].mxu0
        %585 = vmatprep.mubr.bf16.mxu0 %v352
        %586 = vmatmul.mubr.bf16.gmra.mrb[0].mxu0 %v351
        %v587 = vpop.f32.mrb[0].mxu0
        %v588 = vadd.f32 0.0, %v587
        %v589 = vpop.f32.mrb[0].mxu0
        %v590 = vpop.f32.mrb[0].mxu0
        %v591 = vadd.f32 0.0, %v590
        %v592 = vpop.f32.mrb[0].mxu0
        %593 = vmatprep.mubr.bf16.mxu0 %v354
        %594 = vmatmul.mubr.bf16.gmra.mrb[0].mxu0 %v353
        %v595 = vpop.f32.mrb[0].mxu0
        %v596 = vadd.f32 0.0, %v595
        %v597 = vpop.f32.mrb[0].mxu0
        %v598 = vpop.f32.mrb[0].mxu0
        %v599 = vadd.f32 0.0, %v598
        %v600 = vpop.f32.mrb[0].mxu0
        %601 = vmatprep.mubr.bf16.mxu0 %v356
        %602 = vmatmul.mubr.bf16.gmra.mrb[0].mxu0 %v355
        %v603 = vpop.f32.mrb[0].mxu0
        %v604 = vadd.f32 0.0, %v603
        %v605 = vpop.f32.mrb[0].mxu0
        %v606 = vpop.f32.mrb[0].mxu0
        %v607 = vadd.f32 0.0, %v606
        %v608 = vpop.f32.mrb[0].mxu0
        %609 = vmatprep.mubr.bf16.mxu0 %v358
        %610 = vmatmul.mubr.bf16.gmra.mrb[0].mxu0 %v357
        %v611 = vpop.f32.mrb[0].mxu0
        %v612 = vadd.f32 0.0, %v611
        %v613 = vpop.f32.mrb[0].mxu0
        %v614 = vpop.f32.mrb[0].mxu0
        %v615 = vadd.f32 0.0, %v614
        %v616 = vpop.f32.mrb[0].mxu0
        %617 = vmatprep.mubr.bf16.mxu0 %v360
        %618 = vmatmul.mubr.bf16.gmra.mrb[0].mxu0 %v359
        %v619 = vpop.f32.mrb[0].mxu0
        %v620 = vadd.f32 0.0, %v619
        %v621 = vpop.f32.mrb[0].mxu0
        %v622 = vpop.f32.mrb[0].mxu0
        %v623 = vadd.f32 0.0, %v622
        %v624 = vpop.f32.mrb[0].mxu0
        %625 = vmatprep.mubr.bf16.mxu0 %v362
        %626 = vmatmul.mubr.bf16.gmra.mrb[0].mxu0 %v361
        %v627 = vpop.f32.mrb[0].mxu0
        %v628 = vadd.f32 0.0, %v627
        %v629 = vpop.f32.mrb[0].mxu0
        %v630 = vpop.f32.mrb[0].mxu0
        %v631 = vadd.f32 0.0, %v630
        %v632 = vpop.f32.mrb[0].mxu0
        %633 = vmatprep.mubr.bf16.mxu0 %v364
        %634 = vmatmul.mubr.bf16.gmra.mrb[0].mxu0 %v363
        %v635 = vpop.f32.mrb[0].mxu0
        %v636 = vadd.f32 0.0, %v635
        %v637 = vpop.f32.mrb[0].mxu0
        %v638 = vpop.f32.mrb[0].mxu0
        %v639 = vadd.f32 0.0, %v638
        %v640 = vpop.f32.mrb[0].mxu0
        %641 = vmatprep.mubr.bf16.mxu0 %v366
        %642 = vmatmul.mubr.bf16.gmra.mrb[0].mxu0 %v365
        %v643 = vpop.f32.mrb[0].mxu0
        %v644 = vadd.f32 0.0, %v643
        %v645 = vpop.f32.mrb[0].mxu0
        %v646 = vpop.f32.mrb[0].mxu0
        %v647 = vadd.f32 0.0, %v646
        %v648 = vpop.f32.mrb[0].mxu0
        %649 = vmatprep.mubr.bf16.mxu0 %v368
        %650 = vmatmul.mubr.bf16.gmra.mrb[0].mxu0 %v367
        %v651 = vpop.f32.mrb[0].mxu0
        %v652 = vadd.f32 0.0, %v651
        %v653 = vpop.f32.mrb[0].mxu0
        %v654 = vpop.f32.mrb[0].mxu0
        %v655 = vadd.f32 0.0, %v654
        %v656 = vpop.f32.mrb[0].mxu0
        %657 = vdwg.mxu0
        %v658 = vmax.f32 %v532, 0.0
        %v659 = vmax.f32 %v535, 0.0
        %v660 = vmax.f32 %v540, 0.0
        %v661 = vmax.f32 %v543, 0.0
        %v662 = vmax.f32 %v548, 0.0
        %v663 = vmax.f32 %v551, 0.0
        %v664 = vmax.f32 %v556, 0.0
        %v665 = vmax.f32 %v559, 0.0
        %v666 = vmax.f32 %v564, 0.0
        %v667 = vmax.f32 %v567, 0.0
        %v668 = vmax.f32 %v572, 0.0
        %v669 = vmax.f32 %v575, 0.0
        %v670 = vmax.f32 %v580, 0.0
        %v671 = vmax.f32 %v583, 0.0
        %v672 = vmax.f32 %v588, 0.0
        %v673 = vmax.f32 %v591, 0.0
        %v674 = vmax.f32 %v596, 0.0
        %v675 = vmax.f32 %v599, 0.0
        %v676 = vmax.f32 %v604, 0.0
        %v677 = vmax.f32 %v607, 0.0
        %v678 = vmax.f32 %v612, 0.0
        %v679 = vmax.f32 %v615, 0.0
        %v680 = vmax.f32 %v620, 0.0
        %v681 = vmax.f32 %v623, 0.0
        %v682 = vmax.f32 %v628, 0.0
        %v683 = vmax.f32 %v631, 0.0
        %v684 = vmax.f32 %v636, 0.0
        %v685 = vmax.f32 %v639, 0.0
        %v686 = vmax.f32 %v644, 0.0
        %v687 = vmax.f32 %v647, 0.0
        %v688 = vmax.f32 %v652, 0.0
        %v689 = vmax.f32 %v655, 0.0
        %v690 = vpack.c.bf16 %v659, %v658
        %v691 = vpack.c.bf16 %v661, %v660
        %v692 = vpack.c.bf16 %v663, %v662
        %v693 = vpack.c.bf16 %v665, %v664
        %v694 = vpack.c.bf16 %v667, %v666
        %v695 = vpack.c.bf16 %v669, %v668
        %v696 = vpack.c.bf16 %v671, %v670
        %v697 = vpack.c.bf16 %v673, %v672
        %v698 = vpack.c.bf16 %v675, %v674
        %v699 = vpack.c.bf16 %v677, %v676
        %v700 = vpack.c.bf16 %v679, %v678
        %v701 = vpack.c.bf16 %v681, %v680
        %v702 = vpack.c.bf16 %v683, %v682
        %v703 = vpack.c.bf16 %v685, %v684
        %v704 = vpack.c.bf16 %v687, %v686
        %v705 = vpack.c.bf16 %v689, %v688
        %s706 = scalar_lea.vmem [#allocation5], 256
        %v707 = vld [vmem:[%s706] sm:$0xff]
        %v708 = vld [vmem:[%s706 + $0x8] sm:$0xff]
        %v709 = vld [vmem:[%s706 + $0x10] sm:$0xff]
        %v710 = vld [vmem:[%s706 + $0x18] sm:$0xff]
        %v711 = vld [vmem:[%s706 + $0x20] sm:$0xff]
        %v712 = vld [vmem:[%s706 + $0x28] sm:$0xff]
        %v713 = vld [vmem:[%s706 + $0x30] sm:$0xff]
        %v714 = vld [vmem:[%s706 + $0x38] sm:$0xff]
        %v715 = vld [vmem:[%s706 + $0x40] sm:$0xff]
        %v716 = vld [vmem:[%s706 + $0x48] sm:$0xff]
        %v717 = vld [vmem:[%s706 + $0x50] sm:$0xff]
        %v718 = vld [vmem:[%s706 + $0x58] sm:$0xff]
        %v719 = vld [vmem:[%s706 + $0x60] sm:$0xff]
        %v720 = vld [vmem:[%s706 + $0x68] sm:$0xff]
        %v721 = vld [vmem:[%s706 + $0x70] sm:$0xff]
        %v722 = vld [vmem:[%s706 + $0x78] sm:$0xff]
        %v723 = vld [vmem:[%s706 + $0x80] sm:$0xff]
        %v724 = vld [vmem:[%s706 + $0x88] sm:$0xff]
        %v725 = vld [vmem:[%s706 + $0x90] sm:$0xff]
        %v726 = vld [vmem:[%s706 + $0x98] sm:$0xff]
        %v727 = vld [vmem:[%s706 + $0xa0] sm:$0xff]
        %v728 = vld [vmem:[%s706 + $0xa8] sm:$0xff]
        %v729 = vld [vmem:[%s706 + $0xb0] sm:$0xff]
        %v730 = vld [vmem:[%s706 + $0xb8] sm:$0xff]
        %v731 = vld [vmem:[%s706 + $0xc0] sm:$0xff]
        %v732 = vld [vmem:[%s706 + $0xc8] sm:$0xff]
        %v733 = vld [vmem:[%s706 + $0xd0] sm:$0xff]
        %v734 = vld [vmem:[%s706 + $0xd8] sm:$0xff]
        %v735 = vld [vmem:[%s706 + $0xe0] sm:$0xff]
        %v736 = vld [vmem:[%s706 + $0xe8] sm:$0xff]
        %v737 = vld [vmem:[%s706 + $0xf0] sm:$0xff]
        %v738 = vld [vmem:[%s706 + $0xf8] sm:$0xff]
        %v771 = vunpack.c.l.b16 %v707
        %v772 = vunpack.c.h.b16 %v707
        %v773 = vunpack.c.l.b16 %v708
        %v774 = vunpack.c.h.b16 %v708
        %v775 = vunpack.c.l.b16 %v709
        %v776 = vunpack.c.h.b16 %v709
        %v777 = vunpack.c.l.b16 %v710
        %v778 = vunpack.c.h.b16 %v710
        %v779 = vunpack.c.l.b16 %v711
        %v780 = vunpack.c.h.b16 %v711
        %v781 = vunpack.c.l.b16 %v712
        %v782 = vunpack.c.h.b16 %v712
        %v783 = vunpack.c.l.b16 %v713
        %v784 = vunpack.c.h.b16 %v713
        %v785 = vunpack.c.l.b16 %v714
        %v786 = vunpack.c.h.b16 %v714
        %v787 = vunpack.c.l.b16 %v715
        %v788 = vunpack.c.h.b16 %v715
        %v789 = vunpack.c.l.b16 %v716
        %v790 = vunpack.c.h.b16 %v716
        %v791 = vunpack.c.l.b16 %v717
        %v792 = vunpack.c.h.b16 %v717
        %v793 = vunpack.c.l.b16 %v718
        %v794 = vunpack.c.h.b16 %v718
        %v795 = vunpack.c.l.b16 %v719
        %v796 = vunpack.c.h.b16 %v719
        %v797 = vunpack.c.l.b16 %v720
        %v798 = vunpack.c.h.b16 %v720
        %v799 = vunpack.c.l.b16 %v721
        %v800 = vunpack.c.h.b16 %v721
        %v801 = vunpack.c.l.b16 %v722
        %v802 = vunpack.c.h.b16 %v722
        %v803 = vunpack.c.l.b16 %v723
        %v804 = vunpack.c.h.b16 %v723
        %v805 = vunpack.c.l.b16 %v724
        %v806 = vunpack.c.h.b16 %v724
        %v807 = vunpack.c.l.b16 %v725
        %v808 = vunpack.c.h.b16 %v725
        %v809 = vunpack.c.l.b16 %v726
        %v810 = vunpack.c.h.b16 %v726
        %v811 = vunpack.c.l.b16 %v727
        %v812 = vunpack.c.h.b16 %v727
        %v813 = vunpack.c.l.b16 %v728
        %v814 = vunpack.c.h.b16 %v728
        %v815 = vunpack.c.l.b16 %v729
        %v816 = vunpack.c.h.b16 %v729
        %v817 = vunpack.c.l.b16 %v730
        %v818 = vunpack.c.h.b16 %v730
        %v819 = vunpack.c.l.b16 %v731
        %v820 = vunpack.c.h.b16 %v731
        %v821 = vunpack.c.l.b16 %v732
        %v822 = vunpack.c.h.b16 %v732
        %v823 = vunpack.c.l.b16 %v733
        %v824 = vunpack.c.h.b16 %v733
        %v825 = vunpack.c.l.b16 %v734
        %v826 = vunpack.c.h.b16 %v734
        %v827 = vunpack.c.l.b16 %v735
        %v828 = vunpack.c.h.b16 %v735
        %v829 = vunpack.c.l.b16 %v736
        %v830 = vunpack.c.h.b16 %v736
        %v831 = vunpack.c.l.b16 %v737
        %v832 = vunpack.c.h.b16 %v737
        %v833 = vunpack.c.l.b16 %v738
        %v834 = vunpack.c.h.b16 %v738
        %v835 = vpack.c.b16 %v773, %v771
        %v836 = vpack.c.b16 %v774, %v772
        %v837 = vpack.c.b16 %v777, %v775
        %v838 = vpack.c.b16 %v778, %v776
        %v839 = vpack.c.b16 %v781, %v779
        %v840 = vpack.c.b16 %v782, %v780
        %v841 = vpack.c.b16 %v785, %v783
        %v842 = vpack.c.b16 %v786, %v784
        %v843 = vpack.c.b16 %v789, %v787
        %v844 = vpack.c.b16 %v790, %v788
        %v845 = vpack.c.b16 %v793, %v791
        %v846 = vpack.c.b16 %v794, %v792
        %v847 = vpack.c.b16 %v797, %v795
        %v848 = vpack.c.b16 %v798, %v796
        %v849 = vpack.c.b16 %v801, %v799
        %v850 = vpack.c.b16 %v802, %v800
        %v851 = vpack.c.b16 %v805, %v803
        %v852 = vpack.c.b16 %v806, %v804
        %v853 = vpack.c.b16 %v809, %v807
        %v854 = vpack.c.b16 %v810, %v808
        %v855 = vpack.c.b16 %v813, %v811
        %v856 = vpack.c.b16 %v814, %v812
        %v857 = vpack.c.b16 %v817, %v815
        %v858 = vpack.c.b16 %v818, %v816
        %v859 = vpack.c.b16 %v821, %v819
        %v860 = vpack.c.b16 %v822, %v820
        %v861 = vpack.c.b16 %v825, %v823
        %v862 = vpack.c.b16 %v826, %v824
        %v863 = vpack.c.b16 %v829, %v827
        %v864 = vpack.c.b16 %v830, %v828
        %v865 = vpack.c.b16 %v833, %v831
        %v866 = vpack.c.b16 %v834, %v832
        %899 = vmatprep.subr.bf16.mxu0 0
        %900 = vmatpush1.bf16.msra.mxu0 %v690
        %901 = vmatprep.subr.bf16.mxu0 0
        %902 = vmatpush1.bf16.msra.mxu0 %v691
        %903 = vmatprep.subr.bf16.mxu0 0
        %904 = vmatpush1.bf16.msra.mxu0 %v692
        %905 = vmatprep.subr.bf16.mxu0 0
        %906 = vmatpush1.bf16.msra.mxu0 %v693
        %907 = vmatprep.subr.bf16.mxu0 0
        %908 = vmatpush1.bf16.msra.mxu0 %v694
        %909 = vmatprep.subr.bf16.mxu0 0
        %910 = vmatpush1.bf16.msra.mxu0 %v695
        %911 = vmatprep.subr.bf16.mxu0 0
        %912 = vmatpush1.bf16.msra.mxu0 %v696
        %913 = vmatprep.subr.bf16.mxu0 0
        %914 = vmatpush1.bf16.msra.mxu0 %v697
        %915 = vmatprep.subr.bf16.mxu0 0
        %916 = vmatpush1.bf16.msra.mxu0 %v698
        %917 = vmatprep.subr.bf16.mxu0 0
        %918 = vmatpush1.bf16.msra.mxu0 %v699
        %919 = vmatprep.subr.bf16.mxu0 0
        %920 = vmatpush1.bf16.msra.mxu0 %v700
        %921 = vmatprep.subr.bf16.mxu0 0
        %922 = vmatpush1.bf16.msra.mxu0 %v701
        %923 = vmatprep.subr.bf16.mxu0 0
        %924 = vmatpush1.bf16.msra.mxu0 %v702
        %925 = vmatprep.subr.bf16.mxu0 0
        %926 = vmatpush1.bf16.msra.mxu0 %v703
        %927 = vmatprep.subr.bf16.mxu0 0
        %928 = vmatpush1.bf16.msra.mxu0 %v704
        %929 = vmatprep.subr.bf16.mxu0 0
        %930 = vmatpush1.bf16.msra.mxu0 %v705
        %931 = vmatprep.mubr.bf16.mxu0 %v836
        %932 = vmatmul.mubr.bf16.gmra.mrb[0].mxu0 %v835
        %v933 = vpop.f32.mrb[0].mxu0
        %v934 = vadd.f32 0.0, %v933
        %v935 = vpop.f32.mrb[0].mxu0
        %v936 = vpop.f32.mrb[0].mxu0
        %v937 = vadd.f32 0.0, %v936
        %v938 = vpop.f32.mrb[0].mxu0
        %939 = vmatprep.mubr.bf16.mxu0 %v838
        %940 = vmatmul.mubr.bf16.gmra.mrb[0].mxu0 %v837
        %v941 = vpop.f32.mrb[0].mxu0
        %v942 = vadd.f32 0.0, %v941
        %v943 = vpop.f32.mrb[0].mxu0
        %v944 = vpop.f32.mrb[0].mxu0
        %v945 = vadd.f32 0.0, %v944
        %v946 = vpop.f32.mrb[0].mxu0
        %947 = vmatprep.mubr.bf16.mxu0 %v840
        %948 = vmatmul.mubr.bf16.gmra.mrb[0].mxu0 %v839
        %v949 = vpop.f32.mrb[0].mxu0
        %v950 = vadd.f32 0.0, %v949
        %v951 = vpop.f32.mrb[0].mxu0
        %v952 = vpop.f32.mrb[0].mxu0
        %v953 = vadd.f32 0.0, %v952
        %v954 = vpop.f32.mrb[0].mxu0
        %955 = vmatprep.mubr.bf16.mxu0 %v842
        %956 = vmatmul.mubr.bf16.gmra.mrb[0].mxu0 %v841
        %v957 = vpop.f32.mrb[0].mxu0
        %v958 = vadd.f32 0.0, %v957
        %v959 = vpop.f32.mrb[0].mxu0
        %v960 = vpop.f32.mrb[0].mxu0
        %v961 = vadd.f32 0.0, %v960
        %v962 = vpop.f32.mrb[0].mxu0
        %963 = vmatprep.mubr.bf16.mxu0 %v844
        %964 = vmatmul.mubr.bf16.gmra.mrb[0].mxu0 %v843
        %v965 = vpop.f32.mrb[0].mxu0
        %v966 = vadd.f32 0.0, %v965
        %v967 = vpop.f32.mrb[0].mxu0
        %v968 = vpop.f32.mrb[0].mxu0
        %v969 = vadd.f32 0.0, %v968
        %v970 = vpop.f32.mrb[0].mxu0
        %971 = vmatprep.mubr.bf16.mxu0 %v846
        %972 = vmatmul.mubr.bf16.gmra.mrb[0].mxu0 %v845
        %v973 = vpop.f32.mrb[0].mxu0
        %v974 = vadd.f32 0.0, %v973
        %v975 = vpop.f32.mrb[0].mxu0
        %v976 = vpop.f32.mrb[0].mxu0
        %v977 = vadd.f32 0.0, %v976
        %v978 = vpop.f32.mrb[0].mxu0
        %979 = vmatprep.mubr.bf16.mxu0 %v848
        %980 = vmatmul.mubr.bf16.gmra.mrb[0].mxu0 %v847
        %v981 = vpop.f32.mrb[0].mxu0
        %v982 = vadd.f32 0.0, %v981
        %v983 = vpop.f32.mrb[0].mxu0
        %v984 = vpop.f32.mrb[0].mxu0
        %v985 = vadd.f32 0.0, %v984
        %v986 = vpop.f32.mrb[0].mxu0
        %987 = vmatprep.mubr.bf16.mxu0 %v850
        %988 = vmatmul.mubr.bf16.gmra.mrb[0].mxu0 %v849
        %v989 = vpop.f32.mrb[0].mxu0
        %v990 = vadd.f32 0.0, %v989
        %v991 = vpop.f32.mrb[0].mxu0
        %v992 = vpop.f32.mrb[0].mxu0
        %v993 = vadd.f32 0.0, %v992
        %v994 = vpop.f32.mrb[0].mxu0
        %995 = vmatprep.mubr.bf16.mxu0 %v852
        %996 = vmatmul.mubr.bf16.gmra.mrb[0].mxu0 %v851
        %v997 = vpop.f32.mrb[0].mxu0
        %v998 = vadd.f32 0.0, %v997
        %v999 = vpop.f32.mrb[0].mxu0
        %v1000 = vpop.f32.mrb[0].mxu0
        %v1001 = vadd.f32 0.0, %v1000
        %v1002 = vpop.f32.mrb[0].mxu0
        %1003 = vmatprep.mubr.bf16.mxu0 %v854
        %1004 = vmatmul.mubr.bf16.gmra.mrb[0].mxu0 %v853
        %v1005 = vpop.f32.mrb[0].mxu0
        %v1006 = vadd.f32 0.0, %v1005
        %v1007 = vpop.f32.mrb[0].mxu0
        %v1008 = vpop.f32.mrb[0].mxu0
        %v1009 = vadd.f32 0.0, %v1008
        %v1010 = vpop.f32.mrb[0].mxu0
        %1011 = vmatprep.mubr.bf16.mxu0 %v856
        %1012 = vmatmul.mubr.bf16.gmra.mrb[0].mxu0 %v855
        %v1013 = vpop.f32.mrb[0].mxu0
        %v1014 = vadd.f32 0.0, %v1013
        %v1015 = vpop.f32.mrb[0].mxu0
        %v1016 = vpop.f32.mrb[0].mxu0
        %v1017 = vadd.f32 0.0, %v1016
        %v1018 = vpop.f32.mrb[0].mxu0
        %1019 = vmatprep.mubr.bf16.mxu0 %v858
        %1020 = vmatmul.mubr.bf16.gmra.mrb[0].mxu0 %v857
        %v1021 = vpop.f32.mrb[0].mxu0
        %v1022 = vadd.f32 0.0, %v1021
        %v1023 = vpop.f32.mrb[0].mxu0
        %v1024 = vpop.f32.mrb[0].mxu0
        %v1025 = vadd.f32 0.0, %v1024
        %v1026 = vpop.f32.mrb[0].mxu0
        %1027 = vmatprep.mubr.bf16.mxu0 %v860
        %1028 = vmatmul.mubr.bf16.gmra.mrb[0].mxu0 %v859
        %v1029 = vpop.f32.mrb[0].mxu0
        %v1030 = vadd.f32 0.0, %v1029
        %v1031 = vpop.f32.mrb[0].mxu0
        %v1032 = vpop.f32.mrb[0].mxu0
        %v1033 = vadd.f32 0.0, %v1032
        %v1034 = vpop.f32.mrb[0].mxu0
        %1035 = vmatprep.mubr.bf16.mxu0 %v862
        %1036 = vmatmul.mubr.bf16.gmra.mrb[0].mxu0 %v861
        %v1037 = vpop.f32.mrb[0].mxu0
        %v1038 = vadd.f32 0.0, %v1037
        %v1039 = vpop.f32.mrb[0].mxu0
        %v1040 = vpop.f32.mrb[0].mxu0
        %v1041 = vadd.f32 0.0, %v1040
        %v1042 = vpop.f32.mrb[0].mxu0
        %1043 = vmatprep.mubr.bf16.mxu0 %v864
        %1044 = vmatmul.mubr.bf16.gmra.mrb[0].mxu0 %v863
        %v1045 = vpop.f32.mrb[0].mxu0
        %v1046 = vadd.f32 0.0, %v1045
        %v1047 = vpop.f32.mrb[0].mxu0
        %v1048 = vpop.f32.mrb[0].mxu0
        %v1049 = vadd.f32 0.0, %v1048
        %v1050 = vpop.f32.mrb[0].mxu0
        %1051 = vmatprep.mubr.bf16.mxu0 %v866
        %1052 = vmatmul.mubr.bf16.gmra.mrb[0].mxu0 %v865
        %v1053 = vpop.f32.mrb[0].mxu0
        %v1054 = vadd.f32 0.0, %v1053
        %v1055 = vpop.f32.mrb[0].mxu0
        %v1056 = vpop.f32.mrb[0].mxu0
        %v1057 = vadd.f32 0.0, %v1056
        %v1058 = vpop.f32.mrb[0].mxu0
        %1059 = vdwg.mxu0
        %v1060 = vmax.f32 %v934, 0.0
        %v1061 = vmax.f32 %v937, 0.0
        %v1062 = vmax.f32 %v942, 0.0
        %v1063 = vmax.f32 %v945, 0.0
        %v1064 = vmax.f32 %v950, 0.0
        %v1065 = vmax.f32 %v953, 0.0
        %v1066 = vmax.f32 %v958, 0.0
        %v1067 = vmax.f32 %v961, 0.0
        %v1068 = vmax.f32 %v966, 0.0
        %v1069 = vmax.f32 %v969, 0.0
        %v1070 = vmax.f32 %v974, 0.0
        %v1071 = vmax.f32 %v977, 0.0
        %v1072 = vmax.f32 %v982, 0.0
        %v1073 = vmax.f32 %v985, 0.0
        %v1074 = vmax.f32 %v990, 0.0
        %v1075 = vmax.f32 %v993, 0.0
        %v1076 = vmax.f32 %v998, 0.0
        %v1077 = vmax.f32 %v1001, 0.0
        %v1078 = vmax.f32 %v1006, 0.0
        %v1079 = vmax.f32 %v1009, 0.0
        %v1080 = vmax.f32 %v1014, 0.0
        %v1081 = vmax.f32 %v1017, 0.0
        %v1082 = vmax.f32 %v1022, 0.0
        %v1083 = vmax.f32 %v1025, 0.0
        %v1084 = vmax.f32 %v1030, 0.0
        %v1085 = vmax.f32 %v1033, 0.0
        %v1086 = vmax.f32 %v1038, 0.0
        %v1087 = vmax.f32 %v1041, 0.0
        %v1088 = vmax.f32 %v1046, 0.0
        %v1089 = vmax.f32 %v1049, 0.0
        %v1090 = vmax.f32 %v1054, 0.0
        %v1091 = vmax.f32 %v1057, 0.0
        %v1092 = vpack.c.bf16 %v1061, %v1060
        %v1093 = vpack.c.bf16 %v1063, %v1062
        %v1094 = vpack.c.bf16 %v1065, %v1064
        %v1095 = vpack.c.bf16 %v1067, %v1066
        %v1096 = vpack.c.bf16 %v1069, %v1068
        %v1097 = vpack.c.bf16 %v1071, %v1070
        %v1098 = vpack.c.bf16 %v1073, %v1072
        %v1099 = vpack.c.bf16 %v1075, %v1074
        %v1100 = vpack.c.bf16 %v1077, %v1076
        %v1101 = vpack.c.bf16 %v1079, %v1078
        %v1102 = vpack.c.bf16 %v1081, %v1080
        %v1103 = vpack.c.bf16 %v1083, %v1082
        %v1104 = vpack.c.bf16 %v1085, %v1084
        %v1105 = vpack.c.bf16 %v1087, %v1086
        %v1106 = vpack.c.bf16 %v1089, %v1088
        %v1107 = vpack.c.bf16 %v1091, %v1090
        %s1108 = scalar_lea.vmem [#allocation5], 512
        %v1109 = vld [vmem:[%s1108] sm:$0xff]
        %v1110 = vld [vmem:[%s1108 + $0x8] sm:$0xff]
        %v1111 = vld [vmem:[%s1108 + $0x10] sm:$0xff]
        %v1112 = vld [vmem:[%s1108 + $0x18] sm:$0xff]
        %v1113 = vld [vmem:[%s1108 + $0x20] sm:$0xff]
        %v1114 = vld [vmem:[%s1108 + $0x28] sm:$0xff]
        %v1115 = vld [vmem:[%s1108 + $0x30] sm:$0xff]
        %v1116 = vld [vmem:[%s1108 + $0x38] sm:$0xff]
        %v1117 = vld [vmem:[%s1108 + $0x40] sm:$0xff]
        %v1118 = vld [vmem:[%s1108 + $0x48] sm:$0xff]
        %v1119 = vld [vmem:[%s1108 + $0x50] sm:$0xff]
        %v1120 = vld [vmem:[%s1108 + $0x58] sm:$0xff]
        %v1121 = vld [vmem:[%s1108 + $0x60] sm:$0xff]
        %v1122 = vld [vmem:[%s1108 + $0x68] sm:$0xff]
        %v1123 = vld [vmem:[%s1108 + $0x70] sm:$0xff]
        %v1124 = vld [vmem:[%s1108 + $0x78] sm:$0xff]
        %v1125 = vld [vmem:[%s1108 + $0x80] sm:$0xff]
        %v1126 = vld [vmem:[%s1108 + $0x88] sm:$0xff]
        %v1127 = vld [vmem:[%s1108 + $0x90] sm:$0xff]
        %v1128 = vld [vmem:[%s1108 + $0x98] sm:$0xff]
        %v1129 = vld [vmem:[%s1108 + $0xa0] sm:$0xff]
        %v1130 = vld [vmem:[%s1108 + $0xa8] sm:$0xff]
        %v1131 = vld [vmem:[%s1108 + $0xb0] sm:$0xff]
        %v1132 = vld [vmem:[%s1108 + $0xb8] sm:$0xff]
        %v1133 = vld [vmem:[%s1108 + $0xc0] sm:$0xff]
        %v1134 = vld [vmem:[%s1108 + $0xc8] sm:$0xff]
        %v1135 = vld [vmem:[%s1108 + $0xd0] sm:$0xff]
        %v1136 = vld [vmem:[%s1108 + $0xd8] sm:$0xff]
        %v1137 = vld [vmem:[%s1108 + $0xe0] sm:$0xff]
        %v1138 = vld [vmem:[%s1108 + $0xe8] sm:$0xff]
        %v1139 = vld [vmem:[%s1108 + $0xf0] sm:$0xff]
        %v1140 = vld [vmem:[%s1108 + $0xf8] sm:$0xff]
        %v1173 = vunpack.c.l.b16 %v1109
        %v1174 = vunpack.c.h.b16 %v1109
        %v1175 = vunpack.c.l.b16 %v1110
        %v1176 = vunpack.c.h.b16 %v1110
        %v1177 = vunpack.c.l.b16 %v1111
        %v1178 = vunpack.c.h.b16 %v1111
        %v1179 = vunpack.c.l.b16 %v1112
        %v1180 = vunpack.c.h.b16 %v1112
        %v1181 = vunpack.c.l.b16 %v1113
        %v1182 = vunpack.c.h.b16 %v1113
        %v1183 = vunpack.c.l.b16 %v1114
        %v1184 = vunpack.c.h.b16 %v1114
        %v1185 = vunpack.c.l.b16 %v1115
        %v1186 = vunpack.c.h.b16 %v1115
        %v1187 = vunpack.c.l.b16 %v1116
        %v1188 = vunpack.c.h.b16 %v1116
        %v1189 = vunpack.c.l.b16 %v1117
        %v1190 = vunpack.c.h.b16 %v1117
        %v1191 = vunpack.c.l.b16 %v1118
        %v1192 = vunpack.c.h.b16 %v1118
        %v1193 = vunpack.c.l.b16 %v1119
        %v1194 = vunpack.c.h.b16 %v1119
        %v1195 = vunpack.c.l.b16 %v1120
        %v1196 = vunpack.c.h.b16 %v1120
        %v1197 = vunpack.c.l.b16 %v1121
        %v1198 = vunpack.c.h.b16 %v1121
        %v1199 = vunpack.c.l.b16 %v1122
        %v1200 = vunpack.c.h.b16 %v1122
        %v1201 = vunpack.c.l.b16 %v1123
        %v1202 = vunpack.c.h.b16 %v1123
        %v1203 = vunpack.c.l.b16 %v1124
        %v1204 = vunpack.c.h.b16 %v1124
        %v1205 = vunpack.c.l.b16 %v1125
        %v1206 = vunpack.c.h.b16 %v1125
        %v1207 = vunpack.c.l.b16 %v1126
        %v1208 = vunpack.c.h.b16 %v1126
        %v1209 = vunpack.c.l.b16 %v1127
        %v1210 = vunpack.c.h.b16 %v1127
        %v1211 = vunpack.c.l.b16 %v1128
        %v1212 = vunpack.c.h.b16 %v1128
        %v1213 = vunpack.c.l.b16 %v1129
        %v1214 = vunpack.c.h.b16 %v1129
        %v1215 = vunpack.c.l.b16 %v1130
        %v1216 = vunpack.c.h.b16 %v1130
        %v1217 = vunpack.c.l.b16 %v1131
        %v1218 = vunpack.c.h.b16 %v1131
        %v1219 = vunpack.c.l.b16 %v1132
        %v1220 = vunpack.c.h.b16 %v1132
        %v1221 = vunpack.c.l.b16 %v1133
        %v1222 = vunpack.c.h.b16 %v1133
        %v1223 = vunpack.c.l.b16 %v1134
        %v1224 = vunpack.c.h.b16 %v1134
        %v1225 = vunpack.c.l.b16 %v1135
        %v1226 = vunpack.c.h.b16 %v1135
        %v1227 = vunpack.c.l.b16 %v1136
        %v1228 = vunpack.c.h.b16 %v1136
        %v1229 = vunpack.c.l.b16 %v1137
        %v1230 = vunpack.c.h.b16 %v1137
        %v1231 = vunpack.c.l.b16 %v1138
        %v1232 = vunpack.c.h.b16 %v1138
        %v1233 = vunpack.c.l.b16 %v1139
        %v1234 = vunpack.c.h.b16 %v1139
        %v1235 = vunpack.c.l.b16 %v1140
        %v1236 = vunpack.c.h.b16 %v1140
        %v1237 = vpack.c.b16 %v1175, %v1173
        %v1238 = vpack.c.b16 %v1176, %v1174
        %v1239 = vpack.c.b16 %v1179, %v1177
        %v1240 = vpack.c.b16 %v1180, %v1178
        %v1241 = vpack.c.b16 %v1183, %v1181
        %v1242 = vpack.c.b16 %v1184, %v1182
        %v1243 = vpack.c.b16 %v1187, %v1185
        %v1244 = vpack.c.b16 %v1188, %v1186
        %v1245 = vpack.c.b16 %v1191, %v1189
        %v1246 = vpack.c.b16 %v1192, %v1190
        %v1247 = vpack.c.b16 %v1195, %v1193
        %v1248 = vpack.c.b16 %v1196, %v1194
        %v1249 = vpack.c.b16 %v1199, %v1197
        %v1250 = vpack.c.b16 %v1200, %v1198
        %v1251 = vpack.c.b16 %v1203, %v1201
        %v1252 = vpack.c.b16 %v1204, %v1202
        %v1253 = vpack.c.b16 %v1207, %v1205
        %v1254 = vpack.c.b16 %v1208, %v1206
        %v1255 = vpack.c.b16 %v1211, %v1209
        %v1256 = vpack.c.b16 %v1212, %v1210
        %v1257 = vpack.c.b16 %v1215, %v1213
        %v1258 = vpack.c.b16 %v1216, %v1214
        %v1259 = vpack.c.b16 %v1219, %v1217
        %v1260 = vpack.c.b16 %v1220, %v1218
        %v1261 = vpack.c.b16 %v1223, %v1221
        %v1262 = vpack.c.b16 %v1224, %v1222
        %v1263 = vpack.c.b16 %v1227, %v1225
        %v1264 = vpack.c.b16 %v1228, %v1226
        %v1265 = vpack.c.b16 %v1231, %v1229
        %v1266 = vpack.c.b16 %v1232, %v1230
        %v1267 = vpack.c.b16 %v1235, %v1233
        %v1268 = vpack.c.b16 %v1236, %v1234
        %1301 = vmatprep.subr.bf16.mxu0 0
        %1302 = vmatpush1.bf16.msra.mxu0 %v1092
        %1303 = vmatprep.subr.bf16.mxu0 0
        %1304 = vmatpush1.bf16.msra.mxu0 %v1093
        %1305 = vmatprep.subr.bf16.mxu0 0
        %1306 = vmatpush1.bf16.msra.mxu0 %v1094
        %1307 = vmatprep.subr.bf16.mxu0 0
        %1308 = vmatpush1.bf16.msra.mxu0 %v1095
        %1309 = vmatprep.subr.bf16.mxu0 0
        %1310 = vmatpush1.bf16.msra.mxu0 %v1096
        %1311 = vmatprep.subr.bf16.mxu0 0
        %1312 = vmatpush1.bf16.msra.mxu0 %v1097
        %1313 = vmatprep.subr.bf16.mxu0 0
        %1314 = vmatpush1.bf16.msra.mxu0 %v1098
        %1315 = vmatprep.subr.bf16.mxu0 0
        %1316 = vmatpush1.bf16.msra.mxu0 %v1099
        %1317 = vmatprep.subr.bf16.mxu0 0
        %1318 = vmatpush1.bf16.msra.mxu0 %v1100
        %1319 = vmatprep.subr.bf16.mxu0 0
        %1320 = vmatpush1.bf16.msra.mxu0 %v1101
        %1321 = vmatprep.subr.bf16.mxu0 0
        %1322 = vmatpush1.bf16.msra.mxu0 %v1102
        %1323 = vmatprep.subr.bf16.mxu0 0
        %1324 = vmatpush1.bf16.msra.mxu0 %v1103
        %1325 = vmatprep.subr.bf16.mxu0 0
        %1326 = vmatpush1.bf16.msra.mxu0 %v1104
        %1327 = vmatprep.subr.bf16.mxu0 0
        %1328 = vmatpush1.bf16.msra.mxu0 %v1105
        %1329 = vmatprep.subr.bf16.mxu0 0
        %1330 = vmatpush1.bf16.msra.mxu0 %v1106
        %1331 = vmatprep.subr.bf16.mxu0 0
        %1332 = vmatpush1.bf16.msra.mxu0 %v1107
        %1333 = vmatprep.mubr.bf16.mxu0 %v1238
        %1334 = vmatmul.mubr.bf16.gmra.mrb[0].mxu0 %v1237
        %v1335 = vpop.f32.mrb[0].mxu0
        %v1336 = vadd.f32 0.0, %v1335
        %v1337 = vpop.f32.mrb[0].mxu0
        %v1338 = vpop.f32.mrb[0].mxu0
        %v1339 = vadd.f32 0.0, %v1338
        %v1340 = vpop.f32.mrb[0].mxu0
        %1341 = vmatprep.mubr.bf16.mxu0 %v1240
        %1342 = vmatmul.mubr.bf16.gmra.mrb[0].mxu0 %v1239
        %v1343 = vpop.f32.mrb[0].mxu0
        %v1344 = vadd.f32 0.0, %v1343
        %v1345 = vpop.f32.mrb[0].mxu0
        %v1346 = vpop.f32.mrb[0].mxu0
        %v1347 = vadd.f32 0.0, %v1346
        %v1348 = vpop.f32.mrb[0].mxu0
        %1349 = vmatprep.mubr.bf16.mxu0 %v1242
        %1350 = vmatmul.mubr.bf16.gmra.mrb[0].mxu0 %v1241
        %v1351 = vpop.f32.mrb[0].mxu0
        %v1352 = vadd.f32 0.0, %v1351
        %v1353 = vpop.f32.mrb[0].mxu0
        %v1354 = vpop.f32.mrb[0].mxu0
        %v1355 = vadd.f32 0.0, %v1354
        %v1356 = vpop.f32.mrb[0].mxu0
        %1357 = vmatprep.mubr.bf16.mxu0 %v1244
        %1358 = vmatmul.mubr.bf16.gmra.mrb[0].mxu0 %v1243
        %v1359 = vpop.f32.mrb[0].mxu0
        %v1360 = vadd.f32 0.0, %v1359
        %v1361 = vpop.f32.mrb[0].mxu0
        %v1362 = vpop.f32.mrb[0].mxu0
        %v1363 = vadd.f32 0.0, %v1362
        %v1364 = vpop.f32.mrb[0].mxu0
        %1365 = vmatprep.mubr.bf16.mxu0 %v1246
        %1366 = vmatmul.mubr.bf16.gmra.mrb[0].mxu0 %v1245
        %v1367 = vpop.f32.mrb[0].mxu0
        %v1368 = vadd.f32 0.0, %v1367
        %v1369 = vpop.f32.mrb[0].mxu0
        %v1370 = vpop.f32.mrb[0].mxu0
        %v1371 = vadd.f32 0.0, %v1370
        %v1372 = vpop.f32.mrb[0].mxu0
        %1373 = vmatprep.mubr.bf16.mxu0 %v1248
        %1374 = vmatmul.mubr.bf16.gmra.mrb[0].mxu0 %v1247
        %v1375 = vpop.f32.mrb[0].mxu0
        %v1376 = vadd.f32 0.0, %v1375
        %v1377 = vpop.f32.mrb[0].mxu0
        %v1378 = vpop.f32.mrb[0].mxu0
        %v1379 = vadd.f32 0.0, %v1378
        %v1380 = vpop.f32.mrb[0].mxu0
        %1381 = vmatprep.mubr.bf16.mxu0 %v1250
        %1382 = vmatmul.mubr.bf16.gmra.mrb[0].mxu0 %v1249
        %v1383 = vpop.f32.mrb[0].mxu0
        %v1384 = vadd.f32 0.0, %v1383
        %v1385 = vpop.f32.mrb[0].mxu0
        %v1386 = vpop.f32.mrb[0].mxu0
        %v1387 = vadd.f32 0.0, %v1386
        %v1388 = vpop.f32.mrb[0].mxu0
        %1389 = vmatprep.mubr.bf16.mxu0 %v1252
        %1390 = vmatmul.mubr.bf16.gmra.mrb[0].mxu0 %v1251
        %v1391 = vpop.f32.mrb[0].mxu0
        %v1392 = vadd.f32 0.0, %v1391
        %v1393 = vpop.f32.mrb[0].mxu0
        %v1394 = vpop.f32.mrb[0].mxu0
        %v1395 = vadd.f32 0.0, %v1394
        %v1396 = vpop.f32.mrb[0].mxu0
        %1397 = vmatprep.mubr.bf16.mxu0 %v1254
        %1398 = vmatmul.mubr.bf16.gmra.mrb[0].mxu0 %v1253
        %v1399 = vpop.f32.mrb[0].mxu0
        %v1400 = vadd.f32 0.0, %v1399
        %v1401 = vpop.f32.mrb[0].mxu0
        %v1402 = vpop.f32.mrb[0].mxu0
        %v1403 = vadd.f32 0.0, %v1402
        %v1404 = vpop.f32.mrb[0].mxu0
        %1405 = vmatprep.mubr.bf16.mxu0 %v1256
        %1406 = vmatmul.mubr.bf16.gmra.mrb[0].mxu0 %v1255
        %v1407 = vpop.f32.mrb[0].mxu0
        %v1408 = vadd.f32 0.0, %v1407
        %v1409 = vpop.f32.mrb[0].mxu0
        %v1410 = vpop.f32.mrb[0].mxu0
        %v1411 = vadd.f32 0.0, %v1410
        %v1412 = vpop.f32.mrb[0].mxu0
        %1413 = vmatprep.mubr.bf16.mxu0 %v1258
        %1414 = vmatmul.mubr.bf16.gmra.mrb[0].mxu0 %v1257
        %v1415 = vpop.f32.mrb[0].mxu0
        %v1416 = vadd.f32 0.0, %v1415
        %v1417 = vpop.f32.mrb[0].mxu0
        %v1418 = vpop.f32.mrb[0].mxu0
        %v1419 = vadd.f32 0.0, %v1418
        %v1420 = vpop.f32.mrb[0].mxu0
        %1421 = vmatprep.mubr.bf16.mxu0 %v1260
        %1422 = vmatmul.mubr.bf16.gmra.mrb[0].mxu0 %v1259
        %v1423 = vpop.f32.mrb[0].mxu0
        %v1424 = vadd.f32 0.0, %v1423
        %v1425 = vpop.f32.mrb[0].mxu0
        %v1426 = vpop.f32.mrb[0].mxu0
        %v1427 = vadd.f32 0.0, %v1426
        %v1428 = vpop.f32.mrb[0].mxu0
        %1429 = vmatprep.mubr.bf16.mxu0 %v1262
        %1430 = vmatmul.mubr.bf16.gmra.mrb[0].mxu0 %v1261
        %v1431 = vpop.f32.mrb[0].mxu0
        %v1432 = vadd.f32 0.0, %v1431
        %v1433 = vpop.f32.mrb[0].mxu0
        %v1434 = vpop.f32.mrb[0].mxu0
        %v1435 = vadd.f32 0.0, %v1434
        %v1436 = vpop.f32.mrb[0].mxu0
        %1437 = vmatprep.mubr.bf16.mxu0 %v1264
        %1438 = vmatmul.mubr.bf16.gmra.mrb[0].mxu0 %v1263
        %v1439 = vpop.f32.mrb[0].mxu0
        %v1440 = vadd.f32 0.0, %v1439
        %v1441 = vpop.f32.mrb[0].mxu0
        %v1442 = vpop.f32.mrb[0].mxu0
        %v1443 = vadd.f32 0.0, %v1442
        %v1444 = vpop.f32.mrb[0].mxu0
        %1445 = vmatprep.mubr.bf16.mxu0 %v1266
        %1446 = vmatmul.mubr.bf16.gmra.mrb[0].mxu0 %v1265
        %v1447 = vpop.f32.mrb[0].mxu0
        %v1448 = vadd.f32 0.0, %v1447
        %v1449 = vpop.f32.mrb[0].mxu0
        %v1450 = vpop.f32.mrb[0].mxu0
        %v1451 = vadd.f32 0.0, %v1450
        %v1452 = vpop.f32.mrb[0].mxu0
        %1453 = vmatprep.mubr.bf16.mxu0 %v1268
        %1454 = vmatmul.mubr.bf16.gmra.mrb[0].mxu0 %v1267
        %v1455 = vpop.f32.mrb[0].mxu0
        %v1456 = vadd.f32 0.0, %v1455
        %v1457 = vpop.f32.mrb[0].mxu0
        %v1458 = vpop.f32.mrb[0].mxu0
        %v1459 = vadd.f32 0.0, %v1458
        %v1460 = vpop.f32.mrb[0].mxu0
        %1461 = vdwg.mxu0
        %v1462 = vmax.f32 %v1336, 0.0
        %v1463 = vmax.f32 %v1339, 0.0
        %v1464 = vmax.f32 %v1344, 0.0
        %v1465 = vmax.f32 %v1347, 0.0
        %v1466 = vmax.f32 %v1352, 0.0
        %v1467 = vmax.f32 %v1355, 0.0
        %v1468 = vmax.f32 %v1360, 0.0
        %v1469 = vmax.f32 %v1363, 0.0
        %v1470 = vmax.f32 %v1368, 0.0
        %v1471 = vmax.f32 %v1371, 0.0
        %v1472 = vmax.f32 %v1376, 0.0
        %v1473 = vmax.f32 %v1379, 0.0
        %v1474 = vmax.f32 %v1384, 0.0
        %v1475 = vmax.f32 %v1387, 0.0
        %v1476 = vmax.f32 %v1392, 0.0
        %v1477 = vmax.f32 %v1395, 0.0
        %v1478 = vmax.f32 %v1400, 0.0
        %v1479 = vmax.f32 %v1403, 0.0
        %v1480 = vmax.f32 %v1408, 0.0
        %v1481 = vmax.f32 %v1411, 0.0
        %v1482 = vmax.f32 %v1416, 0.0
        %v1483 = vmax.f32 %v1419, 0.0
        %v1484 = vmax.f32 %v1424, 0.0
        %v1485 = vmax.f32 %v1427, 0.0
        %v1486 = vmax.f32 %v1432, 0.0
        %v1487 = vmax.f32 %v1435, 0.0
        %v1488 = vmax.f32 %v1440, 0.0
        %v1489 = vmax.f32 %v1443, 0.0
        %v1490 = vmax.f32 %v1448, 0.0
        %v1491 = vmax.f32 %v1451, 0.0
        %v1492 = vmax.f32 %v1456, 0.0
        %v1493 = vmax.f32 %v1459, 0.0
        %v1494 = vpack.c.bf16 %v1463, %v1462
        %v1495 = vpack.c.bf16 %v1465, %v1464
        %v1496 = vpack.c.bf16 %v1467, %v1466
        %v1497 = vpack.c.bf16 %v1469, %v1468
        %v1498 = vpack.c.bf16 %v1471, %v1470
        %v1499 = vpack.c.bf16 %v1473, %v1472
        %v1500 = vpack.c.bf16 %v1475, %v1474
        %v1501 = vpack.c.bf16 %v1477, %v1476
        %v1502 = vpack.c.bf16 %v1479, %v1478
        %v1503 = vpack.c.bf16 %v1481, %v1480
        %v1504 = vpack.c.bf16 %v1483, %v1482
        %v1505 = vpack.c.bf16 %v1485, %v1484
        %v1506 = vpack.c.bf16 %v1487, %v1486
        %v1507 = vpack.c.bf16 %v1489, %v1488
        %v1508 = vpack.c.bf16 %v1491, %v1490
        %v1509 = vpack.c.bf16 %v1493, %v1492
        %s1510 = scalar_lea.vmem [#allocation5], 768
        %v1511 = vld [vmem:[%s1510] sm:$0xff]
        %v1512 = vld [vmem:[%s1510 + $0x8] sm:$0xff]
        %v1513 = vld [vmem:[%s1510 + $0x10] sm:$0xff]
        %v1514 = vld [vmem:[%s1510 + $0x18] sm:$0xff]
        %v1515 = vld [vmem:[%s1510 + $0x20] sm:$0xff]
        %v1516 = vld [vmem:[%s1510 + $0x28] sm:$0xff]
        %v1517 = vld [vmem:[%s1510 + $0x30] sm:$0xff]
        %v1518 = vld [vmem:[%s1510 + $0x38] sm:$0xff]
        %v1519 = vld [vmem:[%s1510 + $0x40] sm:$0xff]
        %v1520 = vld [vmem:[%s1510 + $0x48] sm:$0xff]
        %v1521 = vld [vmem:[%s1510 + $0x50] sm:$0xff]
        %v1522 = vld [vmem:[%s1510 + $0x58] sm:$0xff]
        %v1523 = vld [vmem:[%s1510 + $0x60] sm:$0xff]
        %v1524 = vld [vmem:[%s1510 + $0x68] sm:$0xff]
        %v1525 = vld [vmem:[%s1510 + $0x70] sm:$0xff]
        %v1526 = vld [vmem:[%s1510 + $0x78] sm:$0xff]
        %v1527 = vld [vmem:[%s1510 + $0x80] sm:$0xff]
        %v1528 = vld [vmem:[%s1510 + $0x88] sm:$0xff]
        %v1529 = vld [vmem:[%s1510 + $0x90] sm:$0xff]
        %v1530 = vld [vmem:[%s1510 + $0x98] sm:$0xff]
        %v1531 = vld [vmem:[%s1510 + $0xa0] sm:$0xff]
        %v1532 = vld [vmem:[%s1510 + $0xa8] sm:$0xff]
        %v1533 = vld [vmem:[%s1510 + $0xb0] sm:$0xff]
        %v1534 = vld [vmem:[%s1510 + $0xb8] sm:$0xff]
        %v1535 = vld [vmem:[%s1510 + $0xc0] sm:$0xff]
        %v1536 = vld [vmem:[%s1510 + $0xc8] sm:$0xff]
        %v1537 = vld [vmem:[%s1510 + $0xd0] sm:$0xff]
        %v1538 = vld [vmem:[%s1510 + $0xd8] sm:$0xff]
        %v1539 = vld [vmem:[%s1510 + $0xe0] sm:$0xff]
        %v1540 = vld [vmem:[%s1510 + $0xe8] sm:$0xff]
        %v1541 = vld [vmem:[%s1510 + $0xf0] sm:$0xff]
        %v1542 = vld [vmem:[%s1510 + $0xf8] sm:$0xff]
        %v1575 = vunpack.c.l.b16 %v1511
        %v1576 = vunpack.c.h.b16 %v1511
        %v1577 = vunpack.c.l.b16 %v1512
        %v1578 = vunpack.c.h.b16 %v1512
        %v1579 = vunpack.c.l.b16 %v1513
        %v1580 = vunpack.c.h.b16 %v1513
        %v1581 = vunpack.c.l.b16 %v1514
        %v1582 = vunpack.c.h.b16 %v1514
        %v1583 = vunpack.c.l.b16 %v1515
        %v1584 = vunpack.c.h.b16 %v1515
        %v1585 = vunpack.c.l.b16 %v1516
        %v1586 = vunpack.c.h.b16 %v1516
        %v1587 = vunpack.c.l.b16 %v1517
        %v1588 = vunpack.c.h.b16 %v1517
        %v1589 = vunpack.c.l.b16 %v1518
        %v1590 = vunpack.c.h.b16 %v1518
        %v1591 = vunpack.c.l.b16 %v1519
        %v1592 = vunpack.c.h.b16 %v1519
        %v1593 = vunpack.c.l.b16 %v1520
        %v1594 = vunpack.c.h.b16 %v1520
        %v1595 = vunpack.c.l.b16 %v1521
        %v1596 = vunpack.c.h.b16 %v1521
        %v1597 = vunpack.c.l.b16 %v1522
        %v1598 = vunpack.c.h.b16 %v1522
        %v1599 = vunpack.c.l.b16 %v1523
        %v1600 = vunpack.c.h.b16 %v1523
        %v1601 = vunpack.c.l.b16 %v1524
        %v1602 = vunpack.c.h.b16 %v1524
        %v1603 = vunpack.c.l.b16 %v1525
        %v1604 = vunpack.c.h.b16 %v1525
        %v1605 = vunpack.c.l.b16 %v1526
        %v1606 = vunpack.c.h.b16 %v1526
        %v1607 = vunpack.c.l.b16 %v1527
        %v1608 = vunpack.c.h.b16 %v1527
        %v1609 = vunpack.c.l.b16 %v1528
        %v1610 = vunpack.c.h.b16 %v1528
        %v1611 = vunpack.c.l.b16 %v1529
        %v1612 = vunpack.c.h.b16 %v1529
        %v1613 = vunpack.c.l.b16 %v1530
        %v1614 = vunpack.c.h.b16 %v1530
        %v1615 = vunpack.c.l.b16 %v1531
        %v1616 = vunpack.c.h.b16 %v1531
        %v1617 = vunpack.c.l.b16 %v1532
        %v1618 = vunpack.c.h.b16 %v1532
        %v1619 = vunpack.c.l.b16 %v1533
        %v1620 = vunpack.c.h.b16 %v1533
        %v1621 = vunpack.c.l.b16 %v1534
        %v1622 = vunpack.c.h.b16 %v1534
        %v1623 = vunpack.c.l.b16 %v1535
        %v1624 = vunpack.c.h.b16 %v1535
        %v1625 = vunpack.c.l.b16 %v1536
        %v1626 = vunpack.c.h.b16 %v1536
        %v1627 = vunpack.c.l.b16 %v1537
        %v1628 = vunpack.c.h.b16 %v1537
        %v1629 = vunpack.c.l.b16 %v1538
        %v1630 = vunpack.c.h.b16 %v1538
        %v1631 = vunpack.c.l.b16 %v1539
        %v1632 = vunpack.c.h.b16 %v1539
        %v1633 = vunpack.c.l.b16 %v1540
        %v1634 = vunpack.c.h.b16 %v1540
        %v1635 = vunpack.c.l.b16 %v1541
        %v1636 = vunpack.c.h.b16 %v1541
        %v1637 = vunpack.c.l.b16 %v1542
        %v1638 = vunpack.c.h.b16 %v1542
        %v1639 = vpack.c.b16 %v1577, %v1575
        %v1640 = vpack.c.b16 %v1578, %v1576
        %v1641 = vpack.c.b16 %v1581, %v1579
        %v1642 = vpack.c.b16 %v1582, %v1580
        %v1643 = vpack.c.b16 %v1585, %v1583
        %v1644 = vpack.c.b16 %v1586, %v1584
        %v1645 = vpack.c.b16 %v1589, %v1587
        %v1646 = vpack.c.b16 %v1590, %v1588
        %v1647 = vpack.c.b16 %v1593, %v1591
        %v1648 = vpack.c.b16 %v1594, %v1592
        %v1649 = vpack.c.b16 %v1597, %v1595
        %v1650 = vpack.c.b16 %v1598, %v1596
        %v1651 = vpack.c.b16 %v1601, %v1599
        %v1652 = vpack.c.b16 %v1602, %v1600
        %v1653 = vpack.c.b16 %v1605, %v1603
        %v1654 = vpack.c.b16 %v1606, %v1604
        %v1655 = vpack.c.b16 %v1609, %v1607
        %v1656 = vpack.c.b16 %v1610, %v1608
        %v1657 = vpack.c.b16 %v1613, %v1611
        %v1658 = vpack.c.b16 %v1614, %v1612
        %v1659 = vpack.c.b16 %v1617, %v1615
        %v1660 = vpack.c.b16 %v1618, %v1616
        %v1661 = vpack.c.b16 %v1621, %v1619
        %v1662 = vpack.c.b16 %v1622, %v1620
        %v1663 = vpack.c.b16 %v1625, %v1623
        %v1664 = vpack.c.b16 %v1626, %v1624
        %v1665 = vpack.c.b16 %v1629, %v1627
        %v1666 = vpack.c.b16 %v1630, %v1628
        %v1667 = vpack.c.b16 %v1633, %v1631
        %v1668 = vpack.c.b16 %v1634, %v1632
        %v1669 = vpack.c.b16 %v1637, %v1635
        %v1670 = vpack.c.b16 %v1638, %v1636
        %1703 = vmatprep.subr.bf16.mxu0 0
        %1704 = vmatpush1.bf16.msra.mxu0 %v1494
        %1705 = vmatprep.subr.bf16.mxu0 0
        %1706 = vmatpush1.bf16.msra.mxu0 %v1495
        %1707 = vmatprep.subr.bf16.mxu0 0
        %1708 = vmatpush1.bf16.msra.mxu0 %v1496
        %1709 = vmatprep.subr.bf16.mxu0 0
        %1710 = vmatpush1.bf16.msra.mxu0 %v1497
        %1711 = vmatprep.subr.bf16.mxu0 0
        %1712 = vmatpush1.bf16.msra.mxu0 %v1498
        %1713 = vmatprep.subr.bf16.mxu0 0
        %1714 = vmatpush1.bf16.msra.mxu0 %v1499
        %1715 = vmatprep.subr.bf16.mxu0 0
        %1716 = vmatpush1.bf16.msra.mxu0 %v1500
        %1717 = vmatprep.subr.bf16.mxu0 0
        %1718 = vmatpush1.bf16.msra.mxu0 %v1501
        %1719 = vmatprep.subr.bf16.mxu0 0
        %1720 = vmatpush1.bf16.msra.mxu0 %v1502
        %1721 = vmatprep.subr.bf16.mxu0 0
        %1722 = vmatpush1.bf16.msra.mxu0 %v1503
        %1723 = vmatprep.subr.bf16.mxu0 0
        %1724 = vmatpush1.bf16.msra.mxu0 %v1504
        %1725 = vmatprep.subr.bf16.mxu0 0
        %1726 = vmatpush1.bf16.msra.mxu0 %v1505
        %1727 = vmatprep.subr.bf16.mxu0 0
        %1728 = vmatpush1.bf16.msra.mxu0 %v1506
        %1729 = vmatprep.subr.bf16.mxu0 0
        %1730 = vmatpush1.bf16.msra.mxu0 %v1507
        %1731 = vmatprep.subr.bf16.mxu0 0
        %1732 = vmatpush1.bf16.msra.mxu0 %v1508
        %1733 = vmatprep.subr.bf16.mxu0 0
        %1734 = vmatpush1.bf16.msra.mxu0 %v1509
        %1735 = vmatprep.mubr.bf16.mxu0 %v1640
        %1736 = vmatmul.mubr.bf16.gmra.mrb[0].mxu0 %v1639
        %v1737 = vpop.f32.mrb[0].mxu0
        %v1738 = vadd.f32 0.0, %v1737
        %v1739 = vpop.f32.mrb[0].mxu0
        %v1740 = vpop.f32.mrb[0].mxu0
        %v1741 = vadd.f32 0.0, %v1740
        %v1742 = vpop.f32.mrb[0].mxu0
        %1743 = vmatprep.mubr.bf16.mxu0 %v1642
        %1744 = vmatmul.mubr.bf16.gmra.mrb[0].mxu0 %v1641
        %v1745 = vpop.f32.mrb[0].mxu0
        %v1746 = vadd.f32 0.0, %v1745
        %v1747 = vpop.f32.mrb[0].mxu0
        %v1748 = vpop.f32.mrb[0].mxu0
        %v1749 = vadd.f32 0.0, %v1748
        %v1750 = vpop.f32.mrb[0].mxu0
        %1751 = vmatprep.mubr.bf16.mxu0 %v1644
        %1752 = vmatmul.mubr.bf16.gmra.mrb[0].mxu0 %v1643
        %v1753 = vpop.f32.mrb[0].mxu0
        %v1754 = vadd.f32 0.0, %v1753
        %v1755 = vpop.f32.mrb[0].mxu0
        %v1756 = vpop.f32.mrb[0].mxu0
        %v1757 = vadd.f32 0.0, %v1756
        %v1758 = vpop.f32.mrb[0].mxu0
        %1759 = vmatprep.mubr.bf16.mxu0 %v1646
        %1760 = vmatmul.mubr.bf16.gmra.mrb[0].mxu0 %v1645
        %v1761 = vpop.f32.mrb[0].mxu0
        %v1762 = vadd.f32 0.0, %v1761
        %v1763 = vpop.f32.mrb[0].mxu0
        %v1764 = vpop.f32.mrb[0].mxu0
        %v1765 = vadd.f32 0.0, %v1764
        %v1766 = vpop.f32.mrb[0].mxu0
        %1767 = vmatprep.mubr.bf16.mxu0 %v1648
        %1768 = vmatmul.mubr.bf16.gmra.mrb[0].mxu0 %v1647
        %v1769 = vpop.f32.mrb[0].mxu0
        %v1770 = vadd.f32 0.0, %v1769
        %v1771 = vpop.f32.mrb[0].mxu0
        %v1772 = vpop.f32.mrb[0].mxu0
        %v1773 = vadd.f32 0.0, %v1772
        %v1774 = vpop.f32.mrb[0].mxu0
        %1775 = vmatprep.mubr.bf16.mxu0 %v1650
        %1776 = vmatmul.mubr.bf16.gmra.mrb[0].mxu0 %v1649
        %v1777 = vpop.f32.mrb[0].mxu0
        %v1778 = vadd.f32 0.0, %v1777
        %v1779 = vpop.f32.mrb[0].mxu0
        %v1780 = vpop.f32.mrb[0].mxu0
        %v1781 = vadd.f32 0.0, %v1780
        %v1782 = vpop.f32.mrb[0].mxu0
        %1783 = vmatprep.mubr.bf16.mxu0 %v1652
        %1784 = vmatmul.mubr.bf16.gmra.mrb[0].mxu0 %v1651
        %v1785 = vpop.f32.mrb[0].mxu0
        %v1786 = vadd.f32 0.0, %v1785
        %v1787 = vpop.f32.mrb[0].mxu0
        %v1788 = vpop.f32.mrb[0].mxu0
        %v1789 = vadd.f32 0.0, %v1788
        %v1790 = vpop.f32.mrb[0].mxu0
        %1791 = vmatprep.mubr.bf16.mxu0 %v1654
        %1792 = vmatmul.mubr.bf16.gmra.mrb[0].mxu0 %v1653
        %v1793 = vpop.f32.mrb[0].mxu0
        %v1794 = vadd.f32 0.0, %v1793
        %v1795 = vpop.f32.mrb[0].mxu0
        %v1796 = vpop.f32.mrb[0].mxu0
        %v1797 = vadd.f32 0.0, %v1796
        %v1798 = vpop.f32.mrb[0].mxu0
        %1799 = vmatprep.mubr.bf16.mxu0 %v1656
        %1800 = vmatmul.mubr.bf16.gmra.mrb[0].mxu0 %v1655
        %v1801 = vpop.f32.mrb[0].mxu0
        %v1802 = vadd.f32 0.0, %v1801
        %v1803 = vpop.f32.mrb[0].mxu0
        %v1804 = vpop.f32.mrb[0].mxu0
        %v1805 = vadd.f32 0.0, %v1804
        %v1806 = vpop.f32.mrb[0].mxu0
        %1807 = vmatprep.mubr.bf16.mxu0 %v1658
        %1808 = vmatmul.mubr.bf16.gmra.mrb[0].mxu0 %v1657
        %v1809 = vpop.f32.mrb[0].mxu0
        %v1810 = vadd.f32 0.0, %v1809
        %v1811 = vpop.f32.mrb[0].mxu0
        %v1812 = vpop.f32.mrb[0].mxu0
        %v1813 = vadd.f32 0.0, %v1812
        %v1814 = vpop.f32.mrb[0].mxu0
        %1815 = vmatprep.mubr.bf16.mxu0 %v1660
        %1816 = vmatmul.mubr.bf16.gmra.mrb[0].mxu0 %v1659
        %v1817 = vpop.f32.mrb[0].mxu0
        %v1818 = vadd.f32 0.0, %v1817
        %v1819 = vpop.f32.mrb[0].mxu0
        %v1820 = vpop.f32.mrb[0].mxu0
        %v1821 = vadd.f32 0.0, %v1820
        %v1822 = vpop.f32.mrb[0].mxu0
        %1823 = vmatprep.mubr.bf16.mxu0 %v1662
        %1824 = vmatmul.mubr.bf16.gmra.mrb[0].mxu0 %v1661
        %v1825 = vpop.f32.mrb[0].mxu0
        %v1826 = vadd.f32 0.0, %v1825
        %v1827 = vpop.f32.mrb[0].mxu0
        %v1828 = vpop.f32.mrb[0].mxu0
        %v1829 = vadd.f32 0.0, %v1828
        %v1830 = vpop.f32.mrb[0].mxu0
        %1831 = vmatprep.mubr.bf16.mxu0 %v1664
        %1832 = vmatmul.mubr.bf16.gmra.mrb[0].mxu0 %v1663
        %v1833 = vpop.f32.mrb[0].mxu0
        %v1834 = vadd.f32 0.0, %v1833
        %v1835 = vpop.f32.mrb[0].mxu0
        %v1836 = vpop.f32.mrb[0].mxu0
        %v1837 = vadd.f32 0.0, %v1836
        %v1838 = vpop.f32.mrb[0].mxu0
        %1839 = vmatprep.mubr.bf16.mxu0 %v1666
        %1840 = vmatmul.mubr.bf16.gmra.mrb[0].mxu0 %v1665
        %v1841 = vpop.f32.mrb[0].mxu0
        %v1842 = vadd.f32 0.0, %v1841
        %v1843 = vpop.f32.mrb[0].mxu0
        %v1844 = vpop.f32.mrb[0].mxu0
        %v1845 = vadd.f32 0.0, %v1844
        %v1846 = vpop.f32.mrb[0].mxu0
        %1847 = vmatprep.mubr.bf16.mxu0 %v1668
        %1848 = vmatmul.mubr.bf16.gmra.mrb[0].mxu0 %v1667
        %v1849 = vpop.f32.mrb[0].mxu0
        %v1850 = vadd.f32 0.0, %v1849
        %v1851 = vpop.f32.mrb[0].mxu0
        %v1852 = vpop.f32.mrb[0].mxu0
        %v1853 = vadd.f32 0.0, %v1852
        %v1854 = vpop.f32.mrb[0].mxu0
        %1855 = vmatprep.mubr.bf16.mxu0 %v1670
        %1856 = vmatmul.mubr.bf16.gmra.mrb[0].mxu0 %v1669
        %v1857 = vpop.f32.mrb[0].mxu0
        %v1858 = vadd.f32 0.0, %v1857
        %v1859 = vpop.f32.mrb[0].mxu0
        %v1860 = vpop.f32.mrb[0].mxu0
        %v1861 = vadd.f32 0.0, %v1860
        %v1862 = vpop.f32.mrb[0].mxu0
        %1863 = vdwg.mxu0
        %v1864 = vmax.f32 %v1738, 0.0
        %v1865 = vmax.f32 %v1741, 0.0
        %v1866 = vmax.f32 %v1746, 0.0
        %v1867 = vmax.f32 %v1749, 0.0
        %v1868 = vmax.f32 %v1754, 0.0
        %v1869 = vmax.f32 %v1757, 0.0
        %v1870 = vmax.f32 %v1762, 0.0
        %v1871 = vmax.f32 %v1765, 0.0
        %v1872 = vmax.f32 %v1770, 0.0
        %v1873 = vmax.f32 %v1773, 0.0
        %v1874 = vmax.f32 %v1778, 0.0
        %v1875 = vmax.f32 %v1781, 0.0
        %v1876 = vmax.f32 %v1786, 0.0
        %v1877 = vmax.f32 %v1789, 0.0
        %v1878 = vmax.f32 %v1794, 0.0
        %v1879 = vmax.f32 %v1797, 0.0
        %v1880 = vmax.f32 %v1802, 0.0
        %v1881 = vmax.f32 %v1805, 0.0
        %v1882 = vmax.f32 %v1810, 0.0
        %v1883 = vmax.f32 %v1813, 0.0
        %v1884 = vmax.f32 %v1818, 0.0
        %v1885 = vmax.f32 %v1821, 0.0
        %v1886 = vmax.f32 %v1826, 0.0
        %v1887 = vmax.f32 %v1829, 0.0
        %v1888 = vmax.f32 %v1834, 0.0
        %v1889 = vmax.f32 %v1837, 0.0
        %v1890 = vmax.f32 %v1842, 0.0
        %v1891 = vmax.f32 %v1845, 0.0
        %v1892 = vmax.f32 %v1850, 0.0
        %v1893 = vmax.f32 %v1853, 0.0
        %v1894 = vmax.f32 %v1858, 0.0
        %v1895 = vmax.f32 %v1861, 0.0
        %v1896 = vpack.c.bf16 %v1865, %v1864
        %v1897 = vpack.c.bf16 %v1867, %v1866
        %v1898 = vpack.c.bf16 %v1869, %v1868
        %v1899 = vpack.c.bf16 %v1871, %v1870
        %v1900 = vpack.c.bf16 %v1873, %v1872
        %v1901 = vpack.c.bf16 %v1875, %v1874
        %v1902 = vpack.c.bf16 %v1877, %v1876
        %v1903 = vpack.c.bf16 %v1879, %v1878
        %v1904 = vpack.c.bf16 %v1881, %v1880
        %v1905 = vpack.c.bf16 %v1883, %v1882
        %v1906 = vpack.c.bf16 %v1885, %v1884
        %v1907 = vpack.c.bf16 %v1887, %v1886
        %v1908 = vpack.c.bf16 %v1889, %v1888
        %v1909 = vpack.c.bf16 %v1891, %v1890
        %v1910 = vpack.c.bf16 %v1893, %v1892
        %v1911 = vpack.c.bf16 %v1895, %v1894
        %s1912 = scalar_lea.vmem [#allocation5], 1024
        %v1913 = vld [vmem:[%s1912] sm:$0xff]
        %v1914 = vld [vmem:[%s1912 + $0x8] sm:$0xff]
        %v1915 = vld [vmem:[%s1912 + $0x10] sm:$0xff]
        %v1916 = vld [vmem:[%s1912 + $0x18] sm:$0xff]
        %v1917 = vld [vmem:[%s1912 + $0x20] sm:$0xff]
        %v1918 = vld [vmem:[%s1912 + $0x28] sm:$0xff]
        %v1919 = vld [vmem:[%s1912 + $0x30] sm:$0xff]
        %v1920 = vld [vmem:[%s1912 + $0x38] sm:$0xff]
        %v1921 = vld [vmem:[%s1912 + $0x40] sm:$0xff]
        %v1922 = vld [vmem:[%s1912 + $0x48] sm:$0xff]
        %v1923 = vld [vmem:[%s1912 + $0x50] sm:$0xff]
        %v1924 = vld [vmem:[%s1912 + $0x58] sm:$0xff]
        %v1925 = vld [vmem:[%s1912 + $0x60] sm:$0xff]
        %v1926 = vld [vmem:[%s1912 + $0x68] sm:$0xff]
        %v1927 = vld [vmem:[%s1912 + $0x70] sm:$0xff]
        %v1928 = vld [vmem:[%s1912 + $0x78] sm:$0xff]
        %v1929 = vld [vmem:[%s1912 + $0x80] sm:$0xff]
        %v1930 = vld [vmem:[%s1912 + $0x88] sm:$0xff]
        %v1931 = vld [vmem:[%s1912 + $0x90] sm:$0xff]
        %v1932 = vld [vmem:[%s1912 + $0x98] sm:$0xff]
        %v1933 = vld [vmem:[%s1912 + $0xa0] sm:$0xff]
        %v1934 = vld [vmem:[%s1912 + $0xa8] sm:$0xff]
        %v1935 = vld [vmem:[%s1912 + $0xb0] sm:$0xff]
        %v1936 = vld [vmem:[%s1912 + $0xb8] sm:$0xff]
        %v1937 = vld [vmem:[%s1912 + $0xc0] sm:$0xff]
        %v1938 = vld [vmem:[%s1912 + $0xc8] sm:$0xff]
        %v1939 = vld [vmem:[%s1912 + $0xd0] sm:$0xff]
        %v1940 = vld [vmem:[%s1912 + $0xd8] sm:$0xff]
        %v1941 = vld [vmem:[%s1912 + $0xe0] sm:$0xff]
        %v1942 = vld [vmem:[%s1912 + $0xe8] sm:$0xff]
        %v1943 = vld [vmem:[%s1912 + $0xf0] sm:$0xff]
        %v1944 = vld [vmem:[%s1912 + $0xf8] sm:$0xff]
        %v1977 = vunpack.c.l.b16 %v1913
        %v1978 = vunpack.c.h.b16 %v1913
        %v1979 = vunpack.c.l.b16 %v1914
        %v1980 = vunpack.c.h.b16 %v1914
        %v1981 = vunpack.c.l.b16 %v1915
        %v1982 = vunpack.c.h.b16 %v1915
        %v1983 = vunpack.c.l.b16 %v1916
        %v1984 = vunpack.c.h.b16 %v1916
        %v1985 = vunpack.c.l.b16 %v1917
        %v1986 = vunpack.c.h.b16 %v1917
        %v1987 = vunpack.c.l.b16 %v1918
        %v1988 = vunpack.c.h.b16 %v1918
        %v1989 = vunpack.c.l.b16 %v1919
        %v1990 = vunpack.c.h.b16 %v1919
        %v1991 = vunpack.c.l.b16 %v1920
        %v1992 = vunpack.c.h.b16 %v1920
        %v1993 = vunpack.c.l.b16 %v1921
        %v1994 = vunpack.c.h.b16 %v1921
        %v1995 = vunpack.c.l.b16 %v1922
        %v1996 = vunpack.c.h.b16 %v1922
        %v1997 = vunpack.c.l.b16 %v1923
        %v1998 = vunpack.c.h.b16 %v1923
        %v1999 = vunpack.c.l.b16 %v1924
        %v2000 = vunpack.c.h.b16 %v1924
        %v2001 = vunpack.c.l.b16 %v1925
        %v2002 = vunpack.c.h.b16 %v1925
        %v2003 = vunpack.c.l.b16 %v1926
        %v2004 = vunpack.c.h.b16 %v1926
        %v2005 = vunpack.c.l.b16 %v1927
        %v2006 = vunpack.c.h.b16 %v1927
        %v2007 = vunpack.c.l.b16 %v1928
        %v2008 = vunpack.c.h.b16 %v1928
        %v2009 = vunpack.c.l.b16 %v1929
        %v2010 = vunpack.c.h.b16 %v1929
        %v2011 = vunpack.c.l.b16 %v1930
        %v2012 = vunpack.c.h.b16 %v1930
        %v2013 = vunpack.c.l.b16 %v1931
        %v2014 = vunpack.c.h.b16 %v1931
        %v2015 = vunpack.c.l.b16 %v1932
        %v2016 = vunpack.c.h.b16 %v1932
        %v2017 = vunpack.c.l.b16 %v1933
        %v2018 = vunpack.c.h.b16 %v1933
        %v2019 = vunpack.c.l.b16 %v1934
        %v2020 = vunpack.c.h.b16 %v1934
        %v2021 = vunpack.c.l.b16 %v1935
        %v2022 = vunpack.c.h.b16 %v1935
        %v2023 = vunpack.c.l.b16 %v1936
        %v2024 = vunpack.c.h.b16 %v1936
        %v2025 = vunpack.c.l.b16 %v1937
        %v2026 = vunpack.c.h.b16 %v1937
        %v2027 = vunpack.c.l.b16 %v1938
        %v2028 = vunpack.c.h.b16 %v1938
        %v2029 = vunpack.c.l.b16 %v1939
        %v2030 = vunpack.c.h.b16 %v1939
        %v2031 = vunpack.c.l.b16 %v1940
        %v2032 = vunpack.c.h.b16 %v1940
        %v2033 = vunpack.c.l.b16 %v1941
        %v2034 = vunpack.c.h.b16 %v1941
        %v2035 = vunpack.c.l.b16 %v1942
        %v2036 = vunpack.c.h.b16 %v1942
        %v2037 = vunpack.c.l.b16 %v1943
        %v2038 = vunpack.c.h.b16 %v1943
        %v2039 = vunpack.c.l.b16 %v1944
        %v2040 = vunpack.c.h.b16 %v1944
        %v2041 = vpack.c.b16 %v1979, %v1977
        %v2042 = vpack.c.b16 %v1980, %v1978
        %v2043 = vpack.c.b16 %v1983, %v1981
        %v2044 = vpack.c.b16 %v1984, %v1982
        %v2045 = vpack.c.b16 %v1987, %v1985
        %v2046 = vpack.c.b16 %v1988, %v1986
        %v2047 = vpack.c.b16 %v1991, %v1989
        %v2048 = vpack.c.b16 %v1992, %v1990
        %v2049 = vpack.c.b16 %v1995, %v1993
        %v2050 = vpack.c.b16 %v1996, %v1994
        %v2051 = vpack.c.b16 %v1999, %v1997
        %v2052 = vpack.c.b16 %v2000, %v1998
        %v2053 = vpack.c.b16 %v2003, %v2001
        %v2054 = vpack.c.b16 %v2004, %v2002
        %v2055 = vpack.c.b16 %v2007, %v2005
        %v2056 = vpack.c.b16 %v2008, %v2006
        %v2057 = vpack.c.b16 %v2011, %v2009
        %v2058 = vpack.c.b16 %v2012, %v2010
        %v2059 = vpack.c.b16 %v2015, %v2013
        %v2060 = vpack.c.b16 %v2016, %v2014
        %v2061 = vpack.c.b16 %v2019, %v2017
        %v2062 = vpack.c.b16 %v2020, %v2018
        %v2063 = vpack.c.b16 %v2023, %v2021
        %v2064 = vpack.c.b16 %v2024, %v2022
        %v2065 = vpack.c.b16 %v2027, %v2025
        %v2066 = vpack.c.b16 %v2028, %v2026
        %v2067 = vpack.c.b16 %v2031, %v2029
        %v2068 = vpack.c.b16 %v2032, %v2030
        %v2069 = vpack.c.b16 %v2035, %v2033
        %v2070 = vpack.c.b16 %v2036, %v2034
        %v2071 = vpack.c.b16 %v2039, %v2037
        %v2072 = vpack.c.b16 %v2040, %v2038
        %2105 = vmatprep.subr.bf16.mxu0 0
        %2106 = vmatpush1.bf16.msra.mxu0 %v1896
        %2107 = vmatprep.subr.bf16.mxu0 0
        %2108 = vmatpush1.bf16.msra.mxu0 %v1897
        %2109 = vmatprep.subr.bf16.mxu0 0
        %2110 = vmatpush1.bf16.msra.mxu0 %v1898
        %2111 = vmatprep.subr.bf16.mxu0 0
        %2112 = vmatpush1.bf16.msra.mxu0 %v1899
        %2113 = vmatprep.subr.bf16.mxu0 0
        %2114 = vmatpush1.bf16.msra.mxu0 %v1900
        %2115 = vmatprep.subr.bf16.mxu0 0
        %2116 = vmatpush1.bf16.msra.mxu0 %v1901
        %2117 = vmatprep.subr.bf16.mxu0 0
        %2118 = vmatpush1.bf16.msra.mxu0 %v1902
        %2119 = vmatprep.subr.bf16.mxu0 0
        %2120 = vmatpush1.bf16.msra.mxu0 %v1903
        %2121 = vmatprep.subr.bf16.mxu0 0
        %2122 = vmatpush1.bf16.msra.mxu0 %v1904
        %2123 = vmatprep.subr.bf16.mxu0 0
        %2124 = vmatpush1.bf16.msra.mxu0 %v1905
        %2125 = vmatprep.subr.bf16.mxu0 0
        %2126 = vmatpush1.bf16.msra.mxu0 %v1906
        %2127 = vmatprep.subr.bf16.mxu0 0
        %2128 = vmatpush1.bf16.msra.mxu0 %v1907
        %2129 = vmatprep.subr.bf16.mxu0 0
        %2130 = vmatpush1.bf16.msra.mxu0 %v1908
        %2131 = vmatprep.subr.bf16.mxu0 0
        %2132 = vmatpush1.bf16.msra.mxu0 %v1909
        %2133 = vmatprep.subr.bf16.mxu0 0
        %2134 = vmatpush1.bf16.msra.mxu0 %v1910
        %2135 = vmatprep.subr.bf16.mxu0 0
        %2136 = vmatpush1.bf16.msra.mxu0 %v1911
        %2137 = vmatprep.mubr.bf16.mxu0 %v2042
        %2138 = vmatmul.mubr.bf16.gmra.mrb[0].mxu0 %v2041
        %v2139 = vpop.f32.mrb[0].mxu0
        %v2140 = vadd.f32 0.0, %v2139
        %v2141 = vpop.f32.mrb[0].mxu0
        %v2142 = vpop.f32.mrb[0].mxu0
        %v2143 = vadd.f32 0.0, %v2142
        %v2144 = vpop.f32.mrb[0].mxu0
        %2145 = vmatprep.mubr.bf16.mxu0 %v2044
        %2146 = vmatmul.mubr.bf16.gmra.mrb[0].mxu0 %v2043
        %v2147 = vpop.f32.mrb[0].mxu0
        %v2148 = vadd.f32 0.0, %v2147
        %v2149 = vpop.f32.mrb[0].mxu0
        %v2150 = vpop.f32.mrb[0].mxu0
        %v2151 = vadd.f32 0.0, %v2150
        %v2152 = vpop.f32.mrb[0].mxu0
        %2153 = vmatprep.mubr.bf16.mxu0 %v2046
        %2154 = vmatmul.mubr.bf16.gmra.mrb[0].mxu0 %v2045
        %v2155 = vpop.f32.mrb[0].mxu0
        %v2156 = vadd.f32 0.0, %v2155
        %v2157 = vpop.f32.mrb[0].mxu0
        %v2158 = vpop.f32.mrb[0].mxu0
        %v2159 = vadd.f32 0.0, %v2158
        %v2160 = vpop.f32.mrb[0].mxu0
        %2161 = vmatprep.mubr.bf16.mxu0 %v2048
        %2162 = vmatmul.mubr.bf16.gmra.mrb[0].mxu0 %v2047
        %v2163 = vpop.f32.mrb[0].mxu0
        %v2164 = vadd.f32 0.0, %v2163
        %v2165 = vpop.f32.mrb[0].mxu0
        %v2166 = vpop.f32.mrb[0].mxu0
        %v2167 = vadd.f32 0.0, %v2166
        %v2168 = vpop.f32.mrb[0].mxu0
        %2169 = vmatprep.mubr.bf16.mxu0 %v2050
        %2170 = vmatmul.mubr.bf16.gmra.mrb[0].mxu0 %v2049
        %v2171 = vpop.f32.mrb[0].mxu0
        %v2172 = vadd.f32 0.0, %v2171
        %v2173 = vpop.f32.mrb[0].mxu0
        %v2174 = vpop.f32.mrb[0].mxu0
        %v2175 = vadd.f32 0.0, %v2174
        %v2176 = vpop.f32.mrb[0].mxu0
        %2177 = vmatprep.mubr.bf16.mxu0 %v2052
        %2178 = vmatmul.mubr.bf16.gmra.mrb[0].mxu0 %v2051
        %v2179 = vpop.f32.mrb[0].mxu0
        %v2180 = vadd.f32 0.0, %v2179
        %v2181 = vpop.f32.mrb[0].mxu0
        %v2182 = vpop.f32.mrb[0].mxu0
        %v2183 = vadd.f32 0.0, %v2182
        %v2184 = vpop.f32.mrb[0].mxu0
        %2185 = vmatprep.mubr.bf16.mxu0 %v2054
        %2186 = vmatmul.mubr.bf16.gmra.mrb[0].mxu0 %v2053
        %v2187 = vpop.f32.mrb[0].mxu0
        %v2188 = vadd.f32 0.0, %v2187
        %v2189 = vpop.f32.mrb[0].mxu0
        %v2190 = vpop.f32.mrb[0].mxu0
        %v2191 = vadd.f32 0.0, %v2190
        %v2192 = vpop.f32.mrb[0].mxu0
        %2193 = vmatprep.mubr.bf16.mxu0 %v2056
        %2194 = vmatmul.mubr.bf16.gmra.mrb[0].mxu0 %v2055
        %v2195 = vpop.f32.mrb[0].mxu0
        %v2196 = vadd.f32 0.0, %v2195
        %v2197 = vpop.f32.mrb[0].mxu0
        %v2198 = vpop.f32.mrb[0].mxu0
        %v2199 = vadd.f32 0.0, %v2198
        %v2200 = vpop.f32.mrb[0].mxu0
        %2201 = vmatprep.mubr.bf16.mxu0 %v2058
        %2202 = vmatmul.mubr.bf16.gmra.mrb[0].mxu0 %v2057
        %v2203 = vpop.f32.mrb[0].mxu0
        %v2204 = vadd.f32 0.0, %v2203
        %v2205 = vpop.f32.mrb[0].mxu0
        %v2206 = vpop.f32.mrb[0].mxu0
        %v2207 = vadd.f32 0.0, %v2206
        %v2208 = vpop.f32.mrb[0].mxu0
        %2209 = vmatprep.mubr.bf16.mxu0 %v2060
        %2210 = vmatmul.mubr.bf16.gmra.mrb[0].mxu0 %v2059
        %v2211 = vpop.f32.mrb[0].mxu0
        %v2212 = vadd.f32 0.0, %v2211
        %v2213 = vpop.f32.mrb[0].mxu0
        %v2214 = vpop.f32.mrb[0].mxu0
        %v2215 = vadd.f32 0.0, %v2214
        %v2216 = vpop.f32.mrb[0].mxu0
        %2217 = vmatprep.mubr.bf16.mxu0 %v2062
        %2218 = vmatmul.mubr.bf16.gmra.mrb[0].mxu0 %v2061
        %v2219 = vpop.f32.mrb[0].mxu0
        %v2220 = vadd.f32 0.0, %v2219
        %v2221 = vpop.f32.mrb[0].mxu0
        %v2222 = vpop.f32.mrb[0].mxu0
        %v2223 = vadd.f32 0.0, %v2222
        %v2224 = vpop.f32.mrb[0].mxu0
        %2225 = vmatprep.mubr.bf16.mxu0 %v2064
        %2226 = vmatmul.mubr.bf16.gmra.mrb[0].mxu0 %v2063
        %v2227 = vpop.f32.mrb[0].mxu0
        %v2228 = vadd.f32 0.0, %v2227
        %v2229 = vpop.f32.mrb[0].mxu0
        %v2230 = vpop.f32.mrb[0].mxu0
        %v2231 = vadd.f32 0.0, %v2230
        %v2232 = vpop.f32.mrb[0].mxu0
        %2233 = vmatprep.mubr.bf16.mxu0 %v2066
        %2234 = vmatmul.mubr.bf16.gmra.mrb[0].mxu0 %v2065
        %v2235 = vpop.f32.mrb[0].mxu0
        %v2236 = vadd.f32 0.0, %v2235
        %v2237 = vpop.f32.mrb[0].mxu0
        %v2238 = vpop.f32.mrb[0].mxu0
        %v2239 = vadd.f32 0.0, %v2238
        %v2240 = vpop.f32.mrb[0].mxu0
        %2241 = vmatprep.mubr.bf16.mxu0 %v2068
        %2242 = vmatmul.mubr.bf16.gmra.mrb[0].mxu0 %v2067
        %v2243 = vpop.f32.mrb[0].mxu0
        %v2244 = vadd.f32 0.0, %v2243
        %v2245 = vpop.f32.mrb[0].mxu0
        %v2246 = vpop.f32.mrb[0].mxu0
        %v2247 = vadd.f32 0.0, %v2246
        %v2248 = vpop.f32.mrb[0].mxu0
        %2249 = vmatprep.mubr.bf16.mxu0 %v2070
        %2250 = vmatmul.mubr.bf16.gmra.mrb[0].mxu0 %v2069
        %v2251 = vpop.f32.mrb[0].mxu0
        %v2252 = vadd.f32 0.0, %v2251
        %v2253 = vpop.f32.mrb[0].mxu0
        %v2254 = vpop.f32.mrb[0].mxu0
        %v2255 = vadd.f32 0.0, %v2254
        %v2256 = vpop.f32.mrb[0].mxu0
        %2257 = vmatprep.mubr.bf16.mxu0 %v2072
        %2258 = vmatmul.mubr.bf16.gmra.mrb[0].mxu0 %v2071
        %v2259 = vpop.f32.mrb[0].mxu0
        %v2260 = vadd.f32 0.0, %v2259
        %v2261 = vpop.f32.mrb[0].mxu0
        %v2262 = vpop.f32.mrb[0].mxu0
        %v2263 = vadd.f32 0.0, %v2262
        %v2264 = vpop.f32.mrb[0].mxu0
        %2265 = vdwg.mxu0
        %v2266 = vmax.f32 %v2140, 0.0
        %v2267 = vmax.f32 %v2143, 0.0
        %v2268 = vmax.f32 %v2148, 0.0
        %v2269 = vmax.f32 %v2151, 0.0
        %v2270 = vmax.f32 %v2156, 0.0
        %v2271 = vmax.f32 %v2159, 0.0
        %v2272 = vmax.f32 %v2164, 0.0
        %v2273 = vmax.f32 %v2167, 0.0
        %v2274 = vmax.f32 %v2172, 0.0
        %v2275 = vmax.f32 %v2175, 0.0
        %v2276 = vmax.f32 %v2180, 0.0
        %v2277 = vmax.f32 %v2183, 0.0
        %v2278 = vmax.f32 %v2188, 0.0
        %v2279 = vmax.f32 %v2191, 0.0
        %v2280 = vmax.f32 %v2196, 0.0
        %v2281 = vmax.f32 %v2199, 0.0
        %v2282 = vmax.f32 %v2204, 0.0
        %v2283 = vmax.f32 %v2207, 0.0
        %v2284 = vmax.f32 %v2212, 0.0
        %v2285 = vmax.f32 %v2215, 0.0
        %v2286 = vmax.f32 %v2220, 0.0
        %v2287 = vmax.f32 %v2223, 0.0
        %v2288 = vmax.f32 %v2228, 0.0
        %v2289 = vmax.f32 %v2231, 0.0
        %v2290 = vmax.f32 %v2236, 0.0
        %v2291 = vmax.f32 %v2239, 0.0
        %v2292 = vmax.f32 %v2244, 0.0
        %v2293 = vmax.f32 %v2247, 0.0
        %v2294 = vmax.f32 %v2252, 0.0
        %v2295 = vmax.f32 %v2255, 0.0
        %v2296 = vmax.f32 %v2260, 0.0
        %v2297 = vmax.f32 %v2263, 0.0
        %v2298 = vpack.c.bf16 %v2267, %v2266
        %v2299 = vpack.c.bf16 %v2269, %v2268
        %v2300 = vpack.c.bf16 %v2271, %v2270
        %v2301 = vpack.c.bf16 %v2273, %v2272
        %v2302 = vpack.c.bf16 %v2275, %v2274
        %v2303 = vpack.c.bf16 %v2277, %v2276
        %v2304 = vpack.c.bf16 %v2279, %v2278
        %v2305 = vpack.c.bf16 %v2281, %v2280
        %v2306 = vpack.c.bf16 %v2283, %v2282
        %v2307 = vpack.c.bf16 %v2285, %v2284
        %v2308 = vpack.c.bf16 %v2287, %v2286
        %v2309 = vpack.c.bf16 %v2289, %v2288
        %v2310 = vpack.c.bf16 %v2291, %v2290
        %v2311 = vpack.c.bf16 %v2293, %v2292
        %v2312 = vpack.c.bf16 %v2295, %v2294
        %v2313 = vpack.c.bf16 %v2297, %v2296
        %v2330 = vunpack.c.l.b16 %v2298
        %v2331 = vunpack.c.h.b16 %v2298
        %v2332 = vunpack.c.l.b16 %v2299
        %v2333 = vunpack.c.h.b16 %v2299
        %v2334 = vunpack.c.l.b16 %v2300
        %v2335 = vunpack.c.h.b16 %v2300
        %v2336 = vunpack.c.l.b16 %v2301
        %v2337 = vunpack.c.h.b16 %v2301
        %v2338 = vunpack.c.l.b16 %v2302
        %v2339 = vunpack.c.h.b16 %v2302
        %v2340 = vunpack.c.l.b16 %v2303
        %v2341 = vunpack.c.h.b16 %v2303
        %v2342 = vunpack.c.l.b16 %v2304
        %v2343 = vunpack.c.h.b16 %v2304
        %v2344 = vunpack.c.l.b16 %v2305
        %v2345 = vunpack.c.h.b16 %v2305
        %v2346 = vunpack.c.l.b16 %v2306
        %v2347 = vunpack.c.h.b16 %v2306
        %v2348 = vunpack.c.l.b16 %v2307
        %v2349 = vunpack.c.h.b16 %v2307
        %v2350 = vunpack.c.l.b16 %v2308
        %v2351 = vunpack.c.h.b16 %v2308
        %v2352 = vunpack.c.l.b16 %v2309
        %v2353 = vunpack.c.h.b16 %v2309
        %v2354 = vunpack.c.l.b16 %v2310
        %v2355 = vunpack.c.h.b16 %v2310
        %v2356 = vunpack.c.l.b16 %v2311
        %v2357 = vunpack.c.h.b16 %v2311
        %v2358 = vunpack.c.l.b16 %v2312
        %v2359 = vunpack.c.h.b16 %v2312
        %v2360 = vunpack.c.l.b16 %v2313
        %v2361 = vunpack.c.h.b16 %v2313
        %v2362 = vpack.c.b16 %v2330, %v2330
        %v2363 = vpack.c.b16 %v2331, %v2331
        %v2364 = vpack.c.b16 %v2332, %v2332
        %v2365 = vpack.c.b16 %v2333, %v2333
        %v2366 = vpack.c.b16 %v2334, %v2334
        %v2367 = vpack.c.b16 %v2335, %v2335
        %v2368 = vpack.c.b16 %v2336, %v2336
        %v2369 = vpack.c.b16 %v2337, %v2337
        %v2370 = vpack.c.b16 %v2338, %v2338
        %v2371 = vpack.c.b16 %v2339, %v2339
        %v2372 = vpack.c.b16 %v2340, %v2340
        %v2373 = vpack.c.b16 %v2341, %v2341
        %v2374 = vpack.c.b16 %v2342, %v2342
        %v2375 = vpack.c.b16 %v2343, %v2343
        %v2376 = vpack.c.b16 %v2344, %v2344
        %v2377 = vpack.c.b16 %v2345, %v2345
        %v2378 = vpack.c.b16 %v2346, %v2346
        %v2379 = vpack.c.b16 %v2347, %v2347
        %v2380 = vpack.c.b16 %v2348, %v2348
        %v2381 = vpack.c.b16 %v2349, %v2349
        %v2382 = vpack.c.b16 %v2350, %v2350
        %v2383 = vpack.c.b16 %v2351, %v2351
        %v2384 = vpack.c.b16 %v2352, %v2352
        %v2385 = vpack.c.b16 %v2353, %v2353
        %v2386 = vpack.c.b16 %v2354, %v2354
        %v2387 = vpack.c.b16 %v2355, %v2355
        %v2388 = vpack.c.b16 %v2356, %v2356
        %v2389 = vpack.c.b16 %v2357, %v2357
        %v2390 = vpack.c.b16 %v2358, %v2358
        %v2391 = vpack.c.b16 %v2359, %v2359
        %v2392 = vpack.c.b16 %v2360, %v2360
        %v2393 = vpack.c.b16 %v2361, %v2361
        %2426 = vst [vmem:[%s175] sm:$0xf] %v2362
        %2427 = vst [vmem:[%s175 + $0x4] sm:$0xf] %v2363
        %2428 = vst [vmem:[%s175 + $0x8] sm:$0xf] %v2364
        %2429 = vst [vmem:[%s175 + $0xc] sm:$0xf] %v2365
        %2430 = vst [vmem:[%s175 + $0x10] sm:$0xf] %v2366
        %2431 = vst [vmem:[%s175 + $0x14] sm:$0xf] %v2367
        %2432 = vst [vmem:[%s175 + $0x18] sm:$0xf] %v2368
        %2433 = vst [vmem:[%s175 + $0x1c] sm:$0xf] %v2369
        %2434 = vst [vmem:[%s175 + $0x20] sm:$0xf] %v2370
        %2435 = vst [vmem:[%s175 + $0x24] sm:$0xf] %v2371
        %2436 = vst [vmem:[%s175 + $0x28] sm:$0xf] %v2372
        %2437 = vst [vmem:[%s175 + $0x2c] sm:$0xf] %v2373
        %2438 = vst [vmem:[%s175 + $0x30] sm:$0xf] %v2374
        %2439 = vst [vmem:[%s175 + $0x34] sm:$0xf] %v2375
        %2440 = vst [vmem:[%s175 + $0x38] sm:$0xf] %v2376
        %2441 = vst [vmem:[%s175 + $0x3c] sm:$0xf] %v2377
        %2442 = vst [vmem:[%s175 + $0x40] sm:$0xf] %v2378
        %2443 = vst [vmem:[%s175 + $0x44] sm:$0xf] %v2379
        %2444 = vst [vmem:[%s175 + $0x48] sm:$0xf] %v2380
        %2445 = vst [vmem:[%s175 + $0x4c] sm:$0xf] %v2381
        %2446 = vst [vmem:[%s175 + $0x50] sm:$0xf] %v2382
        %2447 = vst [vmem:[%s175 + $0x54] sm:$0xf] %v2383
        %2448 = vst [vmem:[%s175 + $0x58] sm:$0xf] %v2384
        %2449 = vst [vmem:[%s175 + $0x5c] sm:$0xf] %v2385
        %2450 = vst [vmem:[%s175 + $0x60] sm:$0xf] %v2386
        %2451 = vst [vmem:[%s175 + $0x64] sm:$0xf] %v2387
        %2452 = vst [vmem:[%s175 + $0x68] sm:$0xf] %v2388
        %2453 = vst [vmem:[%s175 + $0x6c] sm:$0xf] %v2389
        %2454 = vst [vmem:[%s175 + $0x70] sm:$0xf] %v2390
        %2455 = vst [vmem:[%s175 + $0x74] sm:$0xf] %v2391
        %2456 = vst [vmem:[%s175 + $0x78] sm:$0xf] %v2392
        %2457 = vst [vmem:[%s175 + $0x7c] sm:$0xf] %v2393
        %s2458 = sand.u32 %s75, 1
        %s2459 = scalar_lea.sflag [#allocation4], %s2458
        %s2460 = sand.u32 %s75, 1
        %s2461 = smul.addr %s2460, 128
        %s2462 = scalar_lea.vmem [#allocation7], %s2461
        // Predicated region
        $region37: #{tpu_custom_call.1} parent=27 // pred_check
          %p2463 = pneg %p85
        $region38: #{tpu_custom_call.1} parent=27 // pred_check_branch
          %2465 = sbr.rel (%p2463) target = $region40
        $region39: #{tpu_custom_call.1} parent=27 // pred_region
          %s2467 = ssub.s32 2048, 2048
          %2468 = vsyncadd %s2459, %s2467
          %s2469 = smul.addr %s20, 64
          %s2470 = scalar_lea.hbm %s2, %s2469
          %s2471 = sshll.u32 %s2462, 4
          %s2472 = int_to_ptr.vmem [resolvable:$true] %s2471
          %2477 = dma.vmem_to_hbm [thread:$0]  %s2472, 2048, %s2470, %s2459, 64, 128, 4
        $region40: #{tpu_custom_call.1} parent=27 // pred_fallthru
          _
      $region28: #{tpu_custom_call.1} parent=5 // pred_fallthru
        _
      %p2478 = scmp.le.s32.totalorder 2, %s15
      // Predicated region
      $region41: #{tpu_custom_call.1} parent=5 // pred_check
        %p2479 = pneg %p2478
      $region42: #{tpu_custom_call.1} parent=5 // pred_check_branch
        %2481 = sbr.rel (%p2479) target = $region44
      $region43: #{tpu_custom_call.1} parent=5 // pred_region
        %s2482 = ssub.s32 %s15, 2
        // Predicated region
        $region45: #{tpu_custom_call.1} parent=43 // pred_check
          %p2483 = pneg %p91
        $region46: #{tpu_custom_call.1} parent=43 // pred_check_branch
          %2485 = sbr.rel (%p2483) target = $region48
        $region47: #{tpu_custom_call.1} parent=43 // pred_region
          %s2486 = sand.u32 %s76, 1
          %s2487 = scalar_lea.sflag [#allocation4], %s2486
          %s2488 = sand.u32 %s76, 1
          %s2489 = smul.addr %s2488, 128
          %s2490 = scalar_lea.vmem [#allocation7], %s2489
          %2491 = dma.done %s2487, 2048
        $region48: #{tpu_custom_call.1} parent=43 // pred_fallthru
          _
      $region44: #{tpu_custom_call.1} parent=5 // pred_fallthru
        _
    $region6: #{tpu_custom_call.1} parent=1 // loop_footer
      %s19 = sadd.s32 1, %s15
    $region7: #{tpu_custom_call.1} parent=1 // loop_footer_branch
      %14 = sbr.rel target = $region3
    $region8: #{tpu_custom_call.1} parent=1 // loop_exit
      _
    %2492 = vsyncpa [#allocation3], 1
    %s2493 = scalar_lea.sflag [#allocation3], 1
    %2494 = vsyncpa %s2493, 1
    %2495 = vsyncpa [#allocation6], 1
    %2496 = vsyncpa [#allocation4], 1
    %s2497 = scalar_lea.sflag [#allocation4], 1
    %2498 = vsyncpa %s2497, 1

</llo_original>
